<compile_context>
chip_gen: v5e
topology: v5e:2x2
jax: 0.10.0
libtpu: 0.0.40
codegen_flags: <defaults>
</compile_context>

<pallas_src>
import math

import jax
import jax.numpy as jnp
from jax.experimental import pallas as pl
from jax.experimental.pallas import tpu as pltpu


def _round_up(a, m):
    return (a + m - 1) // m * m


# ----------------------------------------------------------------------------
# Fused forward kernel factory
# ----------------------------------------------------------------------------
def _make_fused_kernel(*, num_hidden_layers, nz, noise_p, z_p, z_dim, std):
    L = num_hidden_layers
    log2pi = math.log(2.0 * math.pi)

    def kernel(*args):
        x_ref, eps0_ref, eps_ref = args[0], args[1], args[2]
        x_recon_ref, stats_ref = args[-2], args[-1]
        w_args = args[3:-2]
        it = iter(w_args)

        def nxt():
            return next(it)

        def matmul(a, w_ref):
            w = w_ref[...]
            return jnp.dot(a.astype(w.dtype), w, preferred_element_type=jnp.float32)

        def linear(a, w_ref, b_ref):
            return matmul(a, w_ref) + b_ref[...]

        def softplus(v):
            # numerically stable log(1 + exp(v)) (== F.softplus)
            return jnp.maximum(v, 0.0) + jnp.log1p(jnp.exp(-jnp.abs(v)))

        tile_b = x_ref.shape[0]
        tbnz = eps0_ref.shape[0]

        x = x_ref[...]  # (tile_b, input_dim) f32

        # ---------------- Aux encoder: x -> (mu_qz0 | logvar_qz0) -----------
        h0 = x
        for _ in range(L):
            w, b = nxt(), nxt()
            h0 = softplus(linear(h0, w, b))
        w, b = nxt(), nxt()
        head0 = linear(h0, w, b)                 # (tile_b, 2*noise_p), 128-aligned
        mu_qz0 = head0[:, :noise_p]
        logvar_qz0 = head0[:, noise_p:]

        # expand rows across nz (interleaved: row i -> rows i*nz..i*nz+nz-1,
        # matching torch unsqueeze(1).expand(B,nz,.).view(B*nz,-1))
        if nz > 1:
            rows = jax.lax.broadcasted_iota(jnp.int32, (tbnz, tile_b), 0)
            cols = jax.lax.broadcasted_iota(jnp.int32, (tbnz, tile_b), 1)
            rep = (rows // nz == cols).astype(jnp.float32)

            def expand(a):
                return jnp.dot(rep, a, preferred_element_type=jnp.float32)

            mu_qz0_e = expand(mu_qz0)
            logvar_qz0_e = expand(logvar_qz0)
            x_e = expand(x)
        else:
            mu_qz0_e, logvar_qz0_e, x_e = mu_qz0, logvar_qz0, x

        # z0 = mu + std * exp(0.5*logvar) * eps0   (padded cols stay exactly 0)
        z0 = mu_qz0_e + std * jnp.exp(0.5 * logvar_qz0_e) * eps0_ref[...]

        # ---------------- Simple encoder: [x, z0] -> (mu_qz | logvar_qz) ----
        # concat([x, z0]) @ W  ==  x @ W[:input_dim] + z0 @ W[input_dim:]
        w_x, w_z, b0 = nxt(), nxt(), nxt()
        h = softplus(matmul(x_e, w_x) + matmul(z0, w_z) + b0[...])
        for _ in range(L - 1):
            w, b = nxt(), nxt()
            h = softplus(linear(h, w, b))
        w, b = nxt(), nxt()
        head = linear(h, w, b)                   # (tbnz, 2*z_p), 128-aligned
        mu_qz = head[:, :z_p]
        logvar_qz = head[:, z_p:]
        z = mu_qz + std * jnp.exp(0.5 * logvar_qz) * eps_ref[...]

        # ---------------- Decoder + sigmoid -----------------------------------
        hd = z
        for _ in range(L):
            w, b = nxt(), nxt()
            hd = softplus(linear(hd, w, b))
        w, b = nxt(), nxt()
        logit = linear(hd, w, b)                 # (tbnz, input_dim)
        # stable sigmoid via tanh (one EUP op, no inf intermediates)
        x_recon_ref[...] = 0.5 * (jnp.tanh(0.5 * logit) + 1.0)

        # ---------------- Per-sample losses (fused, logit never hits HBM) -----
        bce = (jnp.maximum(logit, 0.0) - logit * x_e
               + jnp.log1p(jnp.exp(-jnp.abs(logit))))
        recon = jnp.sum(bce, axis=-1, keepdims=True)         # (tbnz, 1)
        prior = 0.5 * float(z_dim) * log2pi + 0.5 * jnp.sum(z * z, axis=-1,
                                                            keepdims=True)

        # lane-dense stats slab: [0:z_dim]=z, [z_dim]=recon, [z_dim+1]=prior
        lane = jax.lax.broadcasted_iota(jnp.int32, z.shape, 1)
        stats = (z
                 + jnp.where(lane == z_dim, recon, 0.0)
                 + jnp.where(lane == z_dim + 1, prior, 0.0))
        stats_ref[...] = stats

    return kernel


# ----------------------------------------------------------------------------
# Parameter initialization (xavier-uniform like reset_parameters), zero-padded
# to 128-lane-aligned widths, weights stored in bf16 (MXU operands).
# ----------------------------------------------------------------------------
def _xavier(key, fan_in, fan_out):
    limit = math.sqrt(6.0 / (fan_in + fan_out))
    return jax.random.uniform(key, (fan_in, fan_out), jnp.float32, -limit, limit)


def init_params(key, input_dim, noise_dim, h_dim, z_dim, num_hidden_layers=2,
                param_dtype=jnp.bfloat16):
    L = num_hidden_layers
    noise_p = _round_up(noise_dim, 128)
    z_p = _round_up(z_dim + 2, 128)       # +2 lanes reserved for packed losses
    h_p = _round_up(h_dim, 128)

    keys = iter(jax.random.split(key, 8 * (L + 4)))

    def nk():
        return next(keys)

    def lin(fan_in, fan_out, in_p, out_p):
        w = _xavier(nk(), fan_in, fan_out)
        wp = jnp.zeros((in_p, out_p), jnp.float32).at[:fan_in, :fan_out].set(w)
        return wp.astype(param_dtype), jnp.zeros((1, out_p), jnp.float32)

    def head(fan_in, fan_out, in_p, out_p):
        # merged (mu | logvar) head: one matmul, 128-aligned split
        wmu = _xavier(nk(), fan_in, fan_out)
        wlv = _xavier(nk(), fan_in, fan_out)
        wp = jnp.zeros((in_p, 2 * out_p), jnp.float32)
        wp = wp.at[:fan_in, :fan_out].set(wmu)
        wp = wp.at[:fan_in, out_p:out_p + fan_out].set(wlv)
        return wp.astype(param_dtype), jnp.zeros((1, 2 * out_p), jnp.float32)

    # Aux encoder
    aux_hidden = []
    din, dinp = input_dim, input_dim
    for _ in range(L):
        aux_hidden.append(lin(din, h_dim, dinp, h_p))
        din, dinp = h_dim, h_p
    aux_head = head(h_dim, noise_dim, h_p, noise_p)

    # Simple encoder: first layer Linear(input_dim + noise_dim, h_dim), split
    # row-wise into an x-part and a z0-part (fuses the concat).
    w_full = _xavier(nk(), input_dim + noise_dim, h_dim)
    w0x = jnp.zeros((input_dim, h_p), jnp.float32).at[:, :h_dim].set(
        w_full[:input_dim])
    w0z = jnp.zeros((noise_p, h_p), jnp.float32).at[:noise_dim, :h_dim].set(
        w_full[input_dim:])
    enc_first = (w0x.astype(param_dtype), w0z.astype(param_dtype),
                 jnp.zeros((1, h_p), jnp.float32))
    enc_hidden = [lin(h_dim, h_dim, h_p, h_p) for _ in range(L - 1)]
    enc_head = head(h_dim, z_dim, h_p, z_p)

    # Decoder
    dec_hidden = []
    din, dinp = z_dim, z_p
    for _ in range(L):
        dec_hidden.append(lin(din, h_dim, dinp, h_p))
        din, dinp = h_dim, h_p
    dec_out = lin(h_dim, input_dim, h_p, input_dim)

    return {
        "dims": dict(input_dim=input_dim, noise_dim=noise_dim, h_dim=h_dim,
                     z_dim=z_dim, noise_p=noise_p, z_p=z_p, h_p=h_p,
                     num_hidden_layers=L),
        "aux": {"hidden": aux_hidden, "head": aux_head},
        "enc": {"first": enc_first, "hidden": enc_hidden, "head": enc_head},
        "dec": {"hidden": dec_hidden, "out": dec_out},
    }


def _flatten_params(params):
    flat = []
    for w, b in params["aux"]["hidden"]:
        flat += [w, b]
    flat += list(params["aux"]["head"])
    flat += list(params["enc"]["first"])
    for w, b in params["enc"]["hidden"]:
        flat += [w, b]
    flat += list(params["enc"]["head"])
    for w, b in params["dec"]["hidden"]:
        flat += [w, b]
    flat += list(params["dec"]["out"])
    return flat


# ----------------------------------------------------------------------------
# Forward pass (mirrors ImplicitPosteriorVAE.forward)
# ----------------------------------------------------------------------------
def implicit_posterior_vae_forward(params, x, eps0, eps, *, beta=1.0, std=None,
                                   nz=1, tile_b=128):
    d = params["dims"]
    input_dim, noise_dim, z_dim = d["input_dim"], d["noise_dim"], d["z_dim"]
    noise_p, z_p, L = d["noise_p"], d["z_p"], d["num_hidden_layers"]
    _std = 1.0 if std is None else float(std)

    B = x.shape[0]
    Bnz = B * nz
    x2 = x.reshape(B, input_dim).astype(jnp.float32)
    eps0_f = eps0.reshape(Bnz, noise_dim).astype(jnp.float32)
    eps_f = eps.reshape(Bnz, z_dim).astype(jnp.float32)

    # batch tiling (tile multiple of 8 for f32 sublanes; pad batch to tile)
    tile = min(int(tile_b), _round_up(B, 8))
    tile = _round_up(tile, 8)
    B_pad = _round_up(B, tile)
    num_tiles = B_pad // tile
    tbnz = tile * nz
    Bnz_pad = B_pad * nz

    x_p = jnp.zeros((B_pad, input_dim), jnp.float32).at[:B].set(x2)
    eps0_p = jnp.zeros((Bnz_pad, noise_p), jnp.float32).at[:Bnz, :noise_dim].set(eps0_f)
    eps_p = jnp.zeros((Bnz_pad, z_p), jnp.float32).at[:Bnz, :z_dim].set(eps_f)

    weights = _flatten_params(params)
    kernel = _make_fused_kernel(num_hidden_layers=L, nz=nz, noise_p=noise_p,
                                z_p=z_p, z_dim=z_dim, std=_std)

    in_specs = [
        pl.BlockSpec((tile, input_dim), lambda i: (i, 0)),   # x (per-tile rows)
        pl.BlockSpec((tbnz, noise_p), lambda i: (i, 0)),     # eps0
        pl.BlockSpec((tbnz, z_p), lambda i: (i, 0)),         # eps
    ] + [
        # weights: full-shape block, constant index -> stays VMEM-resident
        pl.BlockSpec(w.shape, lambda i: (0, 0)) for w in weights
    ]
    out_specs = (
        pl.BlockSpec((tbnz, input_dim), lambda i: (i, 0)),   # x_recon
        pl.BlockSpec((tbnz, z_p), lambda i: (i, 0)),         # stats (z|recon|prior)
    )
    out_shape = (
        jax.ShapeDtypeStruct((Bnz_pad, input_dim), jnp.float32),
        jax.ShapeDtypeStruct((Bnz_pad, z_p), jnp.float32),
    )

    x_recon_p, stats_p = pl.pallas_call(
        kernel,
        grid=(num_tiles,),
        in_specs=in_specs,
        out_specs=out_specs,
        out_shape=out_shape,
        compiler_params=pltpu.CompilerParams(
            dimension_semantics=("parallel",),
            vmem_limit_bytes=32 * 1024 * 1024,
        ),
    )(x_p, eps0_p, eps_p, *weights)

    # strip batch padding / unpack lane-packed stats (tiny epilogue)
    x_recon = x_recon_p[:Bnz]
    z_flat = stats_p[:Bnz, :z_dim]
    recon_per = stats_p[:Bnz, z_dim]
    prior_per = stats_p[:Bnz, z_dim + 1]
    z = z_flat.reshape(B, nz, z_dim)

    # lmbd == 0 in forward default -> jaclmp_loss = 0
    # TODO(synk): jac_clamping_loss path (lmbd > 0) raises NotImplementedError upstream; not implemented.
    loss = jnp.mean(recon_per + beta * prior_per)
    recon_loss = jnp.mean(recon_per)
    prior_loss = jnp.mean(prior_per)

    # torch forward returns (x, sigmoid(logit_px), z, loss, recon, prior);
    # the decoder's x is sigmoid(logit_px), so both are x_recon here.
    return x_recon, x_recon, z, loss, recon_loss, prior_loss


if __name__ == "__main__":
    # small-shape config consistent with the module (MNIST-like, scaled down;
    # input_dim chosen as a multiple of 128 for lane-dense output stores)
    B, C, H, W = 2, 1, 16, 16
    input_dim = C * H * W          # 256
    noise_dim, h_dim, z_dim = 16, 32, 8
    num_hidden_layers = 2
    nz = 1

    root = jax.random.PRNGKey(0)
    k_params, k_x, k_eps0, k_eps = jax.random.split(root, 4)

    params = init_params(k_params, input_dim, noise_dim, h_dim, z_dim,
                         num_hidden_layers=num_hidden_layers,
                         param_dtype=jnp.bfloat16)

    x = jax.random.uniform(k_x, (B, C, H, W), jnp.float32)             # [0,1) images
    eps0 = jax.random.normal(k_eps0, (B * nz, noise_dim), jnp.float32)
    eps = jax.random.normal(k_eps, (B * nz, 1, z_dim), jnp.float32)

    outs = implicit_posterior_vae_forward(params, x, eps0, eps,
                                          beta=1.0, std=None, nz=nz)
    jax.block_until_ready(outs)

    x_recon, x_sig, z, loss, recon_loss, prior_loss = outs
    assert x_recon.shape == (B * nz, input_dim)
    assert x_sig.shape == (B * nz, input_dim)
    assert z.shape == (B, nz, z_dim)
    assert loss.shape == () and recon_loss.shape == () and prior_loss.shape == ()
    assert bool(jnp.isfinite(loss))
    print("KERNEL_OK")
</pallas_src>

<mosaic_0001>
module attributes {stable_mosaic.version = 11 : i64} {
  func.func @kernel(%arg0: i32, %arg1: memref<8x256xf32, #tpu.memory_space<vmem>>, %arg2: memref<8x128xf32, #tpu.memory_space<vmem>>, %arg3: memref<8x128xf32, #tpu.memory_space<vmem>>, %arg4: memref<256x128xbf16, #tpu.memory_space<vmem>>, %arg5: memref<1x128xf32, #tpu.memory_space<vmem>>, %arg6: memref<128x128xbf16, #tpu.memory_space<vmem>>, %arg7: memref<1x128xf32, #tpu.memory_space<vmem>>, %arg8: memref<128x256xbf16, #tpu.memory_space<vmem>>, %arg9: memref<1x256xf32, #tpu.memory_space<vmem>>, %arg10: memref<256x128xbf16, #tpu.memory_space<vmem>>, %arg11: memref<128x128xbf16, #tpu.memory_space<vmem>>, %arg12: memref<1x128xf32, #tpu.memory_space<vmem>>, %arg13: memref<128x128xbf16, #tpu.memory_space<vmem>>, %arg14: memref<1x128xf32, #tpu.memory_space<vmem>>, %arg15: memref<128x256xbf16, #tpu.memory_space<vmem>>, %arg16: memref<1x256xf32, #tpu.memory_space<vmem>>, %arg17: memref<128x128xbf16, #tpu.memory_space<vmem>>, %arg18: memref<1x128xf32, #tpu.memory_space<vmem>>, %arg19: memref<128x128xbf16, #tpu.memory_space<vmem>>, %arg20: memref<1x128xf32, #tpu.memory_space<vmem>>, %arg21: memref<128x256xbf16, #tpu.memory_space<vmem>>, %arg22: memref<1x256xf32, #tpu.memory_space<vmem>>, %arg23: memref<8x256xf32, #tpu.memory_space<vmem>>, %arg24: memref<8x128xf32, #tpu.memory_space<vmem>>) attributes {dimension_semantics = [#tpu.dimension_semantics<parallel>], iteration_bounds = array<i64: 1>, scalar_prefetch = 0 : i64, scratch_operands = 0 : i64, tpu.core_type = #tpu.core_type<tc>, window_params = [{transform_indices = @transform_0, window_bounds = array<i64: 8, 256>}, {transform_indices = @transform_1, window_bounds = array<i64: 8, 128>}, {transform_indices = @transform_2, window_bounds = array<i64: 8, 128>}, {pipeline_mode = #tpu.pipeline_mode<synchronous>, transform_indices = @transform_3, window_bounds = array<i64: 256, 128>}, {pipeline_mode = #tpu.pipeline_mode<synchronous>, transform_indices = @transform_4, window_bounds = array<i64: 1, 128>}, {pipeline_mode = #tpu.pipeline_mode<synchronous>, transform_indices = @transform_5, window_bounds = array<i64: 128, 128>}, {pipeline_mode = #tpu.pipeline_mode<synchronous>, transform_indices = @transform_6, window_bounds = array<i64: 1, 128>}, {pipeline_mode = #tpu.pipeline_mode<synchronous>, transform_indices = @transform_7, window_bounds = array<i64: 128, 256>}, {pipeline_mode = #tpu.pipeline_mode<synchronous>, transform_indices = @transform_8, window_bounds = array<i64: 1, 256>}, {pipeline_mode = #tpu.pipeline_mode<synchronous>, transform_indices = @transform_9, window_bounds = array<i64: 256, 128>}, {pipeline_mode = #tpu.pipeline_mode<synchronous>, transform_indices = @transform_10, window_bounds = array<i64: 128, 128>}, {pipeline_mode = #tpu.pipeline_mode<synchronous>, transform_indices = @transform_11, window_bounds = array<i64: 1, 128>}, {pipeline_mode = #tpu.pipeline_mode<synchronous>, transform_indices = @transform_12, window_bounds = array<i64: 128, 128>}, {pipeline_mode = #tpu.pipeline_mode<synchronous>, transform_indices = @transform_13, window_bounds = array<i64: 1, 128>}, {pipeline_mode = #tpu.pipeline_mode<synchronous>, transform_indices = @transform_14, window_bounds = array<i64: 128, 256>}, {pipeline_mode = #tpu.pipeline_mode<synchronous>, transform_indices = @transform_15, window_bounds = array<i64: 1, 256>}, {pipeline_mode = #tpu.pipeline_mode<synchronous>, transform_indices = @transform_16, window_bounds = array<i64: 128, 128>}, {pipeline_mode = #tpu.pipeline_mode<synchronous>, transform_indices = @transform_17, window_bounds = array<i64: 1, 128>}, {pipeline_mode = #tpu.pipeline_mode<synchronous>, transform_indices = @transform_18, window_bounds = array<i64: 128, 128>}, {pipeline_mode = #tpu.pipeline_mode<synchronous>, transform_indices = @transform_19, window_bounds = array<i64: 1, 128>}, {pipeline_mode = #tpu.pipeline_mode<synchronous>, transform_indices = @transform_20, window_bounds = array<i64: 128, 256>}, {pipeline_mode = #tpu.pipeline_mode<synchronous>, transform_indices = @transform_21, window_bounds = array<i64: 1, 256>}, {transform_indices = @transform_22, window_bounds = array<i64: 8, 256>}, {transform_indices = @transform_23, window_bounds = array<i64: 8, 128>}]} {
    %c0 = arith.constant 0 : index
    %c0_0 = arith.constant 0 : index
    %0 = vector.load %arg1[%c0, %c0_0] : memref<8x256xf32, #tpu.memory_space<vmem>>, vector<8x256xf32>
    %c0_1 = arith.constant 0 : index
    %c0_2 = arith.constant 0 : index
    %1 = vector.load %arg4[%c0_1, %c0_2] : memref<256x128xbf16, #tpu.memory_space<vmem>>, vector<256x128xbf16>
    %2 = arith.truncf %0 : vector<8x256xf32> to vector<8x256xbf16>
    %cst = arith.constant dense<0.000000e+00> : vector<8x128xf32>
    %3 = tpu.matmul %2, %1, %cst {dimension_numbers = #tpu.dot_dimension_numbers<[1], [0], [0], [1], [0, 0, 1, 1], [], []>} : vector<8x256xbf16>, vector<256x128xbf16>, vector<8x128xf32> -> vector<8x128xf32>
    %c0_3 = arith.constant 0 : index
    %c0_4 = arith.constant 0 : index
    %4 = vector.load %arg5[%c0_3, %c0_4] : memref<1x128xf32, #tpu.memory_space<vmem>>, vector<1x128xf32>
    %5 = vector.broadcast %4 : vector<1x128xf32> to vector<8x128xf32>
    %6 = arith.addf %3, %5 : vector<8x128xf32>
    %cst_5 = arith.constant 0.000000e+00 : f32
    %7 = vector.broadcast %cst_5 : f32 to vector<8x128xf32>
    %8 = arith.maximumf %6, %7 : vector<8x128xf32>
    %9 = math.absf %6 : vector<8x128xf32>
    %cst_6 = arith.constant 0.000000e+00 : f32
    %10 = vector.broadcast %cst_6 : f32 to vector<8x128xf32>
    %11 = arith.subf %10, %9 : vector<8x128xf32>
    %12 = math.exp %11 : vector<8x128xf32>
    %13 = math.log1p %12 : vector<8x128xf32>
    %14 = arith.addf %8, %13 : vector<8x128xf32>
    %c0_7 = arith.constant 0 : index
    %c0_8 = arith.constant 0 : index
    %15 = vector.load %arg6[%c0_7, %c0_8] : memref<128x128xbf16, #tpu.memory_space<vmem>>, vector<128x128xbf16>
    %16 = arith.truncf %14 : vector<8x128xf32> to vector<8x128xbf16>
    %cst_9 = arith.constant dense<0.000000e+00> : vector<8x128xf32>
    %17 = tpu.matmul %16, %15, %cst_9 {dimension_numbers = #tpu.dot_dimension_numbers<[1], [0], [0], [1], [0, 0, 1, 1], [], []>} : vector<8x128xbf16>, vector<128x128xbf16>, vector<8x128xf32> -> vector<8x128xf32>
    %c0_10 = arith.constant 0 : index
    %c0_11 = arith.constant 0 : index
    %18 = vector.load %arg7[%c0_10, %c0_11] : memref<1x128xf32, #tpu.memory_space<vmem>>, vector<1x128xf32>
    %19 = vector.broadcast %18 : vector<1x128xf32> to vector<8x128xf32>
    %20 = arith.addf %17, %19 : vector<8x128xf32>
    %cst_12 = arith.constant 0.000000e+00 : f32
    %21 = vector.broadcast %cst_12 : f32 to vector<8x128xf32>
    %22 = arith.maximumf %20, %21 : vector<8x128xf32>
    %23 = math.absf %20 : vector<8x128xf32>
    %cst_13 = arith.constant 0.000000e+00 : f32
    %24 = vector.broadcast %cst_13 : f32 to vector<8x128xf32>
    %25 = arith.subf %24, %23 : vector<8x128xf32>
    %26 = math.exp %25 : vector<8x128xf32>
    %27 = math.log1p %26 : vector<8x128xf32>
    %28 = arith.addf %22, %27 : vector<8x128xf32>
    %c0_14 = arith.constant 0 : index
    %c0_15 = arith.constant 0 : index
    %29 = vector.load %arg8[%c0_14, %c0_15] : memref<128x256xbf16, #tpu.memory_space<vmem>>, vector<128x256xbf16>
    %30 = arith.truncf %28 : vector<8x128xf32> to vector<8x128xbf16>
    %cst_16 = arith.constant dense<0.000000e+00> : vector<8x256xf32>
    %31 = tpu.matmul %30, %29, %cst_16 {dimension_numbers = #tpu.dot_dimension_numbers<[1], [0], [0], [1], [0, 0, 1, 1], [], []>} : vector<8x128xbf16>, vector<128x256xbf16>, vector<8x256xf32> -> vector<8x256xf32>
    %c0_17 = arith.constant 0 : index
    %c0_18 = arith.constant 0 : index
    %32 = vector.load %arg9[%c0_17, %c0_18] : memref<1x256xf32, #tpu.memory_space<vmem>>, vector<1x256xf32>
    %33 = vector.broadcast %32 : vector<1x256xf32> to vector<8x256xf32>
    %34 = arith.addf %31, %33 : vector<8x256xf32>
    %35 = vector.extract_strided_slice %34 {offsets = [0, 0], sizes = [8, 128], strides = [1, 1]} : vector<8x256xf32> to vector<8x128xf32>
    %36 = vector.extract_strided_slice %34 {offsets = [0, 128], sizes = [8, 128], strides = [1, 1]} : vector<8x256xf32> to vector<8x128xf32>
    %cst_19 = arith.constant 5.000000e-01 : f32
    %37 = vector.broadcast %cst_19 : f32 to vector<8x128xf32>
    %38 = arith.mulf %37, %36 : vector<8x128xf32>
    %39 = math.exp %38 : vector<8x128xf32>
    %cst_20 = arith.constant 1.000000e+00 : f32
    %40 = vector.broadcast %cst_20 : f32 to vector<8x128xf32>
    %41 = arith.mulf %40, %39 : vector<8x128xf32>
    %c0_21 = arith.constant 0 : index
    %c0_22 = arith.constant 0 : index
    %42 = vector.load %arg2[%c0_21, %c0_22] : memref<8x128xf32, #tpu.memory_space<vmem>>, vector<8x128xf32>
    %43 = arith.mulf %41, %42 : vector<8x128xf32>
    %44 = arith.addf %35, %43 : vector<8x128xf32>
    %c0_23 = arith.constant 0 : index
    %c0_24 = arith.constant 0 : index
    %45 = vector.load %arg10[%c0_23, %c0_24] : memref<256x128xbf16, #tpu.memory_space<vmem>>, vector<256x128xbf16>
    %46 = arith.truncf %0 : vector<8x256xf32> to vector<8x256xbf16>
    %cst_25 = arith.constant dense<0.000000e+00> : vector<8x128xf32>
    %47 = tpu.matmul %46, %45, %cst_25 {dimension_numbers = #tpu.dot_dimension_numbers<[1], [0], [0], [1], [0, 0, 1, 1], [], []>} : vector<8x256xbf16>, vector<256x128xbf16>, vector<8x128xf32> -> vector<8x128xf32>
    %c0_26 = arith.constant 0 : index
    %c0_27 = arith.constant 0 : index
    %48 = vector.load %arg11[%c0_26, %c0_27] : memref<128x128xbf16, #tpu.memory_space<vmem>>, vector<128x128xbf16>
    %49 = arith.truncf %44 : vector<8x128xf32> to vector<8x128xbf16>
    %cst_28 = arith.constant dense<0.000000e+00> : vector<8x128xf32>
    %50 = tpu.matmul %49, %48, %cst_28 {dimension_numbers = #tpu.dot_dimension_numbers<[1], [0], [0], [1], [0, 0, 1, 1], [], []>} : vector<8x128xbf16>, vector<128x128xbf16>, vector<8x128xf32> -> vector<8x128xf32>
    %51 = arith.addf %47, %50 : vector<8x128xf32>
    %c0_29 = arith.constant 0 : index
    %c0_30 = arith.constant 0 : index
    %52 = vector.load %arg12[%c0_29, %c0_30] : memref<1x128xf32, #tpu.memory_space<vmem>>, vector<1x128xf32>
    %53 = vector.broadcast %52 : vector<1x128xf32> to vector<8x128xf32>
    %54 = arith.addf %51, %53 : vector<8x128xf32>
    %cst_31 = arith.constant 0.000000e+00 : f32
    %55 = vector.broadcast %cst_31 : f32 to vector<8x128xf32>
    %56 = arith.maximumf %54, %55 : vector<8x128xf32>
    %57 = math.absf %54 : vector<8x128xf32>
    %cst_32 = arith.constant 0.000000e+00 : f32
    %58 = vector.broadcast %cst_32 : f32 to vector<8x128xf32>
    %59 = arith.subf %58, %57 : vector<8x128xf32>
    %60 = math.exp %59 : vector<8x128xf32>
    %61 = math.log1p %60 : vector<8x128xf32>
    %62 = arith.addf %56, %61 : vector<8x128xf32>
    %c0_33 = arith.constant 0 : index
    %c0_34 = arith.constant 0 : index
    %63 = vector.load %arg13[%c0_33, %c0_34] : memref<128x128xbf16, #tpu.memory_space<vmem>>, vector<128x128xbf16>
    %64 = arith.truncf %62 : vector<8x128xf32> to vector<8x128xbf16>
    %cst_35 = arith.constant dense<0.000000e+00> : vector<8x128xf32>
    %65 = tpu.matmul %64, %63, %cst_35 {dimension_numbers = #tpu.dot_dimension_numbers<[1], [0], [0], [1], [0, 0, 1, 1], [], []>} : vector<8x128xbf16>, vector<128x128xbf16>, vector<8x128xf32> -> vector<8x128xf32>
    %c0_36 = arith.constant 0 : index
    %c0_37 = arith.constant 0 : index
    %66 = vector.load %arg14[%c0_36, %c0_37] : memref<1x128xf32, #tpu.memory_space<vmem>>, vector<1x128xf32>
    %67 = vector.broadcast %66 : vector<1x128xf32> to vector<8x128xf32>
    %68 = arith.addf %65, %67 : vector<8x128xf32>
    %cst_38 = arith.constant 0.000000e+00 : f32
    %69 = vector.broadcast %cst_38 : f32 to vector<8x128xf32>
    %70 = arith.maximumf %68, %69 : vector<8x128xf32>
    %71 = math.absf %68 : vector<8x128xf32>
    %cst_39 = arith.constant 0.000000e+00 : f32
    %72 = vector.broadcast %cst_39 : f32 to vector<8x128xf32>
    %73 = arith.subf %72, %71 : vector<8x128xf32>
    %74 = math.exp %73 : vector<8x128xf32>
    %75 = math.log1p %74 : vector<8x128xf32>
    %76 = arith.addf %70, %75 : vector<8x128xf32>
    %c0_40 = arith.constant 0 : index
    %c0_41 = arith.constant 0 : index
    %77 = vector.load %arg15[%c0_40, %c0_41] : memref<128x256xbf16, #tpu.memory_space<vmem>>, vector<128x256xbf16>
    %78 = arith.truncf %76 : vector<8x128xf32> to vector<8x128xbf16>
    %cst_42 = arith.constant dense<0.000000e+00> : vector<8x256xf32>
    %79 = tpu.matmul %78, %77, %cst_42 {dimension_numbers = #tpu.dot_dimension_numbers<[1], [0], [0], [1], [0, 0, 1, 1], [], []>} : vector<8x128xbf16>, vector<128x256xbf16>, vector<8x256xf32> -> vector<8x256xf32>
    %c0_43 = arith.constant 0 : index
    %c0_44 = arith.constant 0 : index
    %80 = vector.load %arg16[%c0_43, %c0_44] : memref<1x256xf32, #tpu.memory_space<vmem>>, vector<1x256xf32>
    %81 = vector.broadcast %80 : vector<1x256xf32> to vector<8x256xf32>
    %82 = arith.addf %79, %81 : vector<8x256xf32>
    %83 = vector.extract_strided_slice %82 {offsets = [0, 0], sizes = [8, 128], strides = [1, 1]} : vector<8x256xf32> to vector<8x128xf32>
    %84 = vector.extract_strided_slice %82 {offsets = [0, 128], sizes = [8, 128], strides = [1, 1]} : vector<8x256xf32> to vector<8x128xf32>
    %cst_45 = arith.constant 5.000000e-01 : f32
    %85 = vector.broadcast %cst_45 : f32 to vector<8x128xf32>
    %86 = arith.mulf %85, %84 : vector<8x128xf32>
    %87 = math.exp %86 : vector<8x128xf32>
    %cst_46 = arith.constant 1.000000e+00 : f32
    %88 = vector.broadcast %cst_46 : f32 to vector<8x128xf32>
    %89 = arith.mulf %88, %87 : vector<8x128xf32>
    %c0_47 = arith.constant 0 : index
    %c0_48 = arith.constant 0 : index
    %90 = vector.load %arg3[%c0_47, %c0_48] : memref<8x128xf32, #tpu.memory_space<vmem>>, vector<8x128xf32>
    %91 = arith.mulf %89, %90 : vector<8x128xf32>
    %92 = arith.addf %83, %91 : vector<8x128xf32>
    %c0_49 = arith.constant 0 : index
    %c0_50 = arith.constant 0 : index
    %93 = vector.load %arg17[%c0_49, %c0_50] : memref<128x128xbf16, #tpu.memory_space<vmem>>, vector<128x128xbf16>
    %94 = arith.truncf %92 : vector<8x128xf32> to vector<8x128xbf16>
    %cst_51 = arith.constant dense<0.000000e+00> : vector<8x128xf32>
    %95 = tpu.matmul %94, %93, %cst_51 {dimension_numbers = #tpu.dot_dimension_numbers<[1], [0], [0], [1], [0, 0, 1, 1], [], []>} : vector<8x128xbf16>, vector<128x128xbf16>, vector<8x128xf32> -> vector<8x128xf32>
    %c0_52 = arith.constant 0 : index
    %c0_53 = arith.constant 0 : index
    %96 = vector.load %arg18[%c0_52, %c0_53] : memref<1x128xf32, #tpu.memory_space<vmem>>, vector<1x128xf32>
    %97 = vector.broadcast %96 : vector<1x128xf32> to vector<8x128xf32>
    %98 = arith.addf %95, %97 : vector<8x128xf32>
    %cst_54 = arith.constant 0.000000e+00 : f32
    %99 = vector.broadcast %cst_54 : f32 to vector<8x128xf32>
    %100 = arith.maximumf %98, %99 : vector<8x128xf32>
    %101 = math.absf %98 : vector<8x128xf32>
    %cst_55 = arith.constant 0.000000e+00 : f32
    %102 = vector.broadcast %cst_55 : f32 to vector<8x128xf32>
    %103 = arith.subf %102, %101 : vector<8x128xf32>
    %104 = math.exp %103 : vector<8x128xf32>
    %105 = math.log1p %104 : vector<8x128xf32>
    %106 = arith.addf %100, %105 : vector<8x128xf32>
    %c0_56 = arith.constant 0 : index
    %c0_57 = arith.constant 0 : index
    %107 = vector.load %arg19[%c0_56, %c0_57] : memref<128x128xbf16, #tpu.memory_space<vmem>>, vector<128x128xbf16>
    %108 = arith.truncf %106 : vector<8x128xf32> to vector<8x128xbf16>
    %cst_58 = arith.constant dense<0.000000e+00> : vector<8x128xf32>
    %109 = tpu.matmul %108, %107, %cst_58 {dimension_numbers = #tpu.dot_dimension_numbers<[1], [0], [0], [1], [0, 0, 1, 1], [], []>} : vector<8x128xbf16>, vector<128x128xbf16>, vector<8x128xf32> -> vector<8x128xf32>
    %c0_59 = arith.constant 0 : index
    %c0_60 = arith.constant 0 : index
    %110 = vector.load %arg20[%c0_59, %c0_60] : memref<1x128xf32, #tpu.memory_space<vmem>>, vector<1x128xf32>
    %111 = vector.broadcast %110 : vector<1x128xf32> to vector<8x128xf32>
    %112 = arith.addf %109, %111 : vector<8x128xf32>
    %cst_61 = arith.constant 0.000000e+00 : f32
    %113 = vector.broadcast %cst_61 : f32 to vector<8x128xf32>
    %114 = arith.maximumf %112, %113 : vector<8x128xf32>
    %115 = math.absf %112 : vector<8x128xf32>
    %cst_62 = arith.constant 0.000000e+00 : f32
    %116 = vector.broadcast %cst_62 : f32 to vector<8x128xf32>
    %117 = arith.subf %116, %115 : vector<8x128xf32>
    %118 = math.exp %117 : vector<8x128xf32>
    %119 = math.log1p %118 : vector<8x128xf32>
    %120 = arith.addf %114, %119 : vector<8x128xf32>
    %c0_63 = arith.constant 0 : index
    %c0_64 = arith.constant 0 : index
    %121 = vector.load %arg21[%c0_63, %c0_64] : memref<128x256xbf16, #tpu.memory_space<vmem>>, vector<128x256xbf16>
    %122 = arith.truncf %120 : vector<8x128xf32> to vector<8x128xbf16>
    %cst_65 = arith.constant dense<0.000000e+00> : vector<8x256xf32>
    %123 = tpu.matmul %122, %121, %cst_65 {dimension_numbers = #tpu.dot_dimension_numbers<[1], [0], [0], [1], [0, 0, 1, 1], [], []>} : vector<8x128xbf16>, vector<128x256xbf16>, vector<8x256xf32> -> vector<8x256xf32>
    %c0_66 = arith.constant 0 : index
    %c0_67 = arith.constant 0 : index
    %124 = vector.load %arg22[%c0_66, %c0_67] : memref<1x256xf32, #tpu.memory_space<vmem>>, vector<1x256xf32>
    %125 = vector.broadcast %124 : vector<1x256xf32> to vector<8x256xf32>
    %126 = arith.addf %123, %125 : vector<8x256xf32>
    %cst_68 = arith.constant 5.000000e-01 : f32
    %127 = vector.broadcast %cst_68 : f32 to vector<8x256xf32>
    %128 = arith.mulf %127, %126 : vector<8x256xf32>
    %129 = math.tanh %128 : vector<8x256xf32>
    %cst_69 = arith.constant 1.000000e+00 : f32
    %130 = vector.broadcast %cst_69 : f32 to vector<8x256xf32>
    %131 = arith.addf %129, %130 : vector<8x256xf32>
    %cst_70 = arith.constant 5.000000e-01 : f32
    %132 = vector.broadcast %cst_70 : f32 to vector<8x256xf32>
    %133 = arith.mulf %132, %131 : vector<8x256xf32>
    %c0_71 = arith.constant 0 : index
    %c0_72 = arith.constant 0 : index
    %134 = vector.load %arg23[%c0_71, %c0_72] : memref<8x256xf32, #tpu.memory_space<vmem>>, vector<8x256xf32>
    tpu.vector_store %arg23[%c0_71, %c0_72], %133 {strides = array<i32>} : memref<8x256xf32, #tpu.memory_space<vmem>>, vector<8x256xf32>,
    %cst_73 = arith.constant 0.000000e+00 : f32
    %135 = vector.broadcast %cst_73 : f32 to vector<8x256xf32>
    %136 = arith.maximumf %126, %135 : vector<8x256xf32>
    %137 = arith.mulf %126, %0 : vector<8x256xf32>
    %138 = arith.subf %136, %137 : vector<8x256xf32>
    %139 = math.absf %126 : vector<8x256xf32>
    %cst_74 = arith.constant 0.000000e+00 : f32
    %140 = vector.broadcast %cst_74 : f32 to vector<8x256xf32>
    %141 = arith.subf %140, %139 : vector<8x256xf32>
    %142 = math.exp %141 : vector<8x256xf32>
    %143 = math.log1p %142 : vector<8x256xf32>
    %144 = arith.addf %138, %143 : vector<8x256xf32>
    %cst_75 = arith.constant dense<0.000000e+00> : vector<8xf32>
    %145 = vector.multi_reduction <add>, %144, %cst_75 [1] : vector<8x256xf32> to vector<8xf32>
    %146 = vector.shape_cast %145 : vector<8xf32> to vector<8x1xf32>
    %147 = arith.mulf %92, %92 : vector<8x128xf32>
    %cst_76 = arith.constant dense<0.000000e+00> : vector<8xf32>
    %148 = vector.multi_reduction <add>, %147, %cst_76 [1] : vector<8x128xf32> to vector<8xf32>
    %149 = vector.shape_cast %148 : vector<8xf32> to vector<8x1xf32>
    %cst_77 = arith.constant 5.000000e-01 : f32
    %150 = vector.broadcast %cst_77 : f32 to vector<8x1xf32>
    %151 = arith.mulf %150, %149 : vector<8x1xf32>
    %cst_78 = arith.constant 7.35150814 : f32
    %152 = vector.broadcast %cst_78 : f32 to vector<8x1xf32>
    %153 = arith.addf %152, %151 : vector<8x1xf32>
    %154 = tpu.iota {dimensions = array<i32: 1>} : vector<8x128xi32>
    %c8_i32 = arith.constant 8 : i32
    %155 = vector.broadcast %c8_i32 : i32 to vector<8x128xi32>
    %156 = arith.cmpi eq, %154, %155 : vector<8x128xi32>
    %cst_79 = arith.constant 0.000000e+00 : f32
    %157 = vector.shape_cast %146 : vector<8x1xf32> to vector<8x1xf32>
    %158 = vector.broadcast %157 : vector<8x1xf32> to vector<8x128xf32>
    %159 = vector.broadcast %cst_79 : f32 to vector<8x128xf32>
    %160 = arith.select %156, %158, %159 : vector<8x128xi1>, vector<8x128xf32>
    %161 = arith.addf %92, %160 : vector<8x128xf32>
    %c9_i32 = arith.constant 9 : i32
    %162 = vector.broadcast %c9_i32 : i32 to vector<8x128xi32>
    %163 = arith.cmpi eq, %154, %162 : vector<8x128xi32>
    %cst_80 = arith.constant 0.000000e+00 : f32
    %164 = vector.shape_cast %153 : vector<8x1xf32> to vector<8x1xf32>
    %165 = vector.broadcast %164 : vector<8x1xf32> to vector<8x128xf32>
    %166 = vector.broadcast %cst_80 : f32 to vector<8x128xf32>
    %167 = arith.select %163, %165, %166 : vector<8x128xi1>, vector<8x128xf32>
    %168 = arith.addf %161, %167 : vector<8x128xf32>
    %c0_81 = arith.constant 0 : index
    %c0_82 = arith.constant 0 : index
    %169 = vector.load %arg24[%c0_81, %c0_82] : memref<8x128xf32, #tpu.memory_space<vmem>>, vector<8x128xf32>
    tpu.vector_store %arg24[%c0_81, %c0_82], %168 {strides = array<i32>} : memref<8x128xf32, #tpu.memory_space<vmem>>, vector<8x128xf32>,
    return
  }
  func.func @transform_0(%arg0: i32) -> (i32, i32) {
    %c0_i32 = arith.constant 0 : i32
    %c0_i32_0 = arith.constant 0 : i32
    return %arg0, %c0_i32 : i32, i32
  }
  func.func @transform_1(%arg0: i32) -> (i32, i32) {
    %c0_i32 = arith.constant 0 : i32
    %c0_i32_0 = arith.constant 0 : i32
    return %arg0, %c0_i32 : i32, i32
  }
  func.func @transform_2(%arg0: i32) -> (i32, i32) {
    %c0_i32 = arith.constant 0 : i32
    %c0_i32_0 = arith.constant 0 : i32
    return %arg0, %c0_i32 : i32, i32
  }
  func.func @transform_3(%arg0: i32) -> (i32, i32) {
    %c0_i32 = arith.constant 0 : i32
    %c0_i32_0 = arith.constant 0 : i32
    %c0_i32_1 = arith.constant 0 : i32
    return %c0_i32, %c0_i32_0 : i32, i32
  }
  func.func @transform_4(%arg0: i32) -> (i32, i32) {
    %c0_i32 = arith.constant 0 : i32
    %c0_i32_0 = arith.constant 0 : i32
    %c0_i32_1 = arith.constant 0 : i32
    return %c0_i32, %c0_i32_0 : i32, i32
  }
  func.func @transform_5(%arg0: i32) -> (i32, i32) {
    %c0_i32 = arith.constant 0 : i32
    %c0_i32_0 = arith.constant 0 : i32
    %c0_i32_1 = arith.constant 0 : i32
    return %c0_i32, %c0_i32_0 : i32, i32
  }
  func.func @transform_6(%arg0: i32) -> (i32, i32) {
    %c0_i32 = arith.constant 0 : i32
    %c0_i32_0 = arith.constant 0 : i32
    %c0_i32_1 = arith.constant 0 : i32
    return %c0_i32, %c0_i32_0 : i32, i32
  }
  func.func @transform_7(%arg0: i32) -> (i32, i32) {
    %c0_i32 = arith.constant 0 : i32
    %c0_i32_0 = arith.constant 0 : i32
    %c0_i32_1 = arith.constant 0 : i32
    return %c0_i32, %c0_i32_0 : i32, i32
  }
  func.func @transform_8(%arg0: i32) -> (i32, i32) {
    %c0_i32 = arith.constant 0 : i32
    %c0_i32_0 = arith.constant 0 : i32
    %c0_i32_1 = arith.constant 0 : i32
    return %c0_i32, %c0_i32_0 : i32, i32
  }
  func.func @transform_9(%arg0: i32) -> (i32, i32) {
    %c0_i32 = arith.constant 0 : i32
    %c0_i32_0 = arith.constant 0 : i32
    %c0_i32_1 = arith.constant 0 : i32
    return %c0_i32, %c0_i32_0 : i32, i32
  }
  func.func @transform_10(%arg0: i32) -> (i32, i32) {
    %c0_i32 = arith.constant 0 : i32
    %c0_i32_0 = arith.constant 0 : i32
    %c0_i32_1 = arith.constant 0 : i32
    return %c0_i32, %c0_i32_0 : i32, i32
  }
  func.func @transform_11(%arg0: i32) -> (i32, i32) {
    %c0_i32 = arith.constant 0 : i32
    %c0_i32_0 = arith.constant 0 : i32
    %c0_i32_1 = arith.constant 0 : i32
    return %c0_i32, %c0_i32_0 : i32, i32
  }
  func.func @transform_12(%arg0: i32) -> (i32, i32) {
    %c0_i32 = arith.constant 0 : i32
    %c0_i32_0 = arith.constant 0 : i32
    %c0_i32_1 = arith.constant 0 : i32
    return %c0_i32, %c0_i32_0 : i32, i32
  }
  func.func @transform_13(%arg0: i32) -> (i32, i32) {
    %c0_i32 = arith.constant 0 : i32
    %c0_i32_0 = arith.constant 0 : i32
    %c0_i32_1 = arith.constant 0 : i32
    return %c0_i32, %c0_i32_0 : i32, i32
  }
  func.func @transform_14(%arg0: i32) -> (i32, i32) {
    %c0_i32 = arith.constant 0 : i32
    %c0_i32_0 = arith.constant 0 : i32
    %c0_i32_1 = arith.constant 0 : i32
    return %c0_i32, %c0_i32_0 : i32, i32
  }
  func.func @transform_15(%arg0: i32) -> (i32, i32) {
    %c0_i32 = arith.constant 0 : i32
    %c0_i32_0 = arith.constant 0 : i32
    %c0_i32_1 = arith.constant 0 : i32
    return %c0_i32, %c0_i32_0 : i32, i32
  }
  func.func @transform_16(%arg0: i32) -> (i32, i32) {
    %c0_i32 = arith.constant 0 : i32
    %c0_i32_0 = arith.constant 0 : i32
    %c0_i32_1 = arith.constant 0 : i32
    return %c0_i32, %c0_i32_0 : i32, i32
  }
  func.func @transform_17(%arg0: i32) -> (i32, i32) {
    %c0_i32 = arith.constant 0 : i32
    %c0_i32_0 = arith.constant 0 : i32
    %c0_i32_1 = arith.constant 0 : i32
    return %c0_i32, %c0_i32_0 : i32, i32
  }
  func.func @transform_18(%arg0: i32) -> (i32, i32) {
    %c0_i32 = arith.constant 0 : i32
    %c0_i32_0 = arith.constant 0 : i32
    %c0_i32_1 = arith.constant 0 : i32
    return %c0_i32, %c0_i32_0 : i32, i32
  }
  func.func @transform_19(%arg0: i32) -> (i32, i32) {
    %c0_i32 = arith.constant 0 : i32
    %c0_i32_0 = arith.constant 0 : i32
    %c0_i32_1 = arith.constant 0 : i32
    return %c0_i32, %c0_i32_0 : i32, i32
  }
  func.func @transform_20(%arg0: i32) -> (i32, i32) {
    %c0_i32 = arith.constant 0 : i32
    %c0_i32_0 = arith.constant 0 : i32
    %c0_i32_1 = arith.constant 0 : i32
    return %c0_i32, %c0_i32_0 : i32, i32
  }
  func.func @transform_21(%arg0: i32) -> (i32, i32) {
    %c0_i32 = arith.constant 0 : i32
    %c0_i32_0 = arith.constant 0 : i32
    %c0_i32_1 = arith.constant 0 : i32
    return %c0_i32, %c0_i32_0 : i32, i32
  }
  func.func @transform_22(%arg0: i32) -> (i32, i32) {
    %c0_i32 = arith.constant 0 : i32
    %c0_i32_0 = arith.constant 0 : i32
    return %arg0, %c0_i32 : i32, i32
  }
  func.func @transform_23(%arg0: i32) -> (i32, i32) {
    %c0_i32 = arith.constant 0 : i32
    %c0_i32_0 = arith.constant 0 : i32
    return %arg0, %c0_i32 : i32, i32
  }
}

</mosaic_0001>

<llo_original>
// kernel: tpu_custom_call.1
$region0: #{tpu_custom_call.1}
  #allocation0 [shape = 'u32[]', space=smem, size = 0x4, offset = 0x4, fixed_abs, tag = 'smem constant byte address 0x4 - core index']
  #allocation1 [shape = 'u32[72,128]{1,0:T(1,128)}', space=vmem, size = 0x9000, scoped, tag = 'internal scratch']
  %s0 = inlined_call_operand.hbm [shape: f32[8,256], index: 0, kind: input, shape index: {}]
  %s1 = inlined_call_operand.hbm [shape: f32[8,128], index: 1, kind: input, shape index: {}]
  %s2 = inlined_call_operand.hbm [shape: f32[8,128], index: 2, kind: input, shape index: {}]
  %s3 = inlined_call_operand.hbm [shape: bf16[256,128], index: 3, kind: input, shape index: {}]
  %s4 = inlined_call_operand.hbm [shape: f32[1,128], index: 4, kind: input, shape index: {}]
  %s5 = inlined_call_operand.hbm [shape: bf16[128,128], index: 5, kind: input, shape index: {}]
  %s6 = inlined_call_operand.hbm [shape: f32[1,128], index: 6, kind: input, shape index: {}]
  %s7 = inlined_call_operand.hbm [shape: bf16[128,256], index: 7, kind: input, shape index: {}]
  %s8 = inlined_call_operand.vmem [shape: f32[1,256], index: 8, kind: input, shape index: {}]
  %s9 = inlined_call_operand.hbm [shape: bf16[256,128], index: 9, kind: input, shape index: {}]
  %s10 = inlined_call_operand.hbm [shape: bf16[128,128], index: 10, kind: input, shape index: {}]
  %s11 = inlined_call_operand.vmem [shape: f32[1,128], index: 11, kind: input, shape index: {}]
  %s12 = inlined_call_operand.hbm [shape: bf16[128,128], index: 12, kind: input, shape index: {}]
  %s13 = inlined_call_operand.vmem [shape: f32[1,128], index: 13, kind: input, shape index: {}]
  %s14 = inlined_call_operand.hbm [shape: bf16[128,256], index: 14, kind: input, shape index: {}]
  %s15 = inlined_call_operand.vmem [shape: f32[1,256], index: 15, kind: input, shape index: {}]
  %s16 = inlined_call_operand.hbm [shape: bf16[128,128], index: 16, kind: input, shape index: {}]
  %s17 = inlined_call_operand.vmem [shape: f32[1,128], index: 17, kind: input, shape index: {}]
  %s18 = inlined_call_operand.hbm [shape: bf16[128,128], index: 18, kind: input, shape index: {}]
  %s19 = inlined_call_operand.vmem [shape: f32[1,128], index: 19, kind: input, shape index: {}]
  %s20 = inlined_call_operand.hbm [shape: bf16[128,256], index: 20, kind: input, shape index: {}]
  %s21 = inlined_call_operand.vmem [shape: f32[1,256], index: 21, kind: input, shape index: {}]
  %s22 = inlined_call_operand.hbm [shape: f32[8,256], index: 22, kind: output, shape index: {0}]
  %s23 = inlined_call_operand.hbm [shape: f32[8,128], index: 23, kind: output, shape index: {1}]
  %24 = xla_tuple %s22, %s23
  %s25 = sld [smem:[#allocation0]]
  $region166: #{tpu_custom_call.1} parent=0
    _
  %s27 = ssub.s32 1, %s25
  %s28 = scalar_select 0, %s27, %s25
  $region1: #{tpu_custom_call.1} parent=0
    #allocation2 [shape = 'u8[8192]{0}', space=vmem, size = 0x2000, scoped, tag = 'input window, operand 0, single buffered']
    #allocation3 [shape = 's32[1]{0}', space=sflag, size = 0x4, scoped, tag = 'scoped memory for tpu_custom_call.1']
    #allocation4 [shape = 's32[1]{0}', space=sflag, size = 0x4, scoped, tag = 'scoped memory for tpu_custom_call.1']
    #allocation5 [shape = 'u8[4096]{0}', space=vmem, size = 0x1000, scoped, tag = 'input window, operand 1, single buffered']
    #allocation6 [shape = 's32[1]{0}', space=sflag, size = 0x4, scoped, tag = 'scoped memory for tpu_custom_call.1']
    #allocation7 [shape = 'u8[4096]{0}', space=vmem, size = 0x1000, scoped, tag = 'input window, operand 2, single buffered']
    #allocation8 [shape = 'u8[65536]{0}', space=vmem, size = 0x10000, scoped, tag = 'input window, operand 3, single buffered']
    #allocation9 [shape = 's32[1]{0}', space=sflag, size = 0x4, scoped, tag = 'scoped memory for tpu_custom_call.1']
    #allocation10 [shape = 'u8[512]{0}', space=vmem, size = 0x400, scoped, tag = 'input window, operand 4, single buffered']
    #allocation11 [shape = 'u8[32768]{0}', space=vmem, size = 0x8000, scoped, tag = 'input window, operand 5, single buffered']
    #allocation12 [shape = 's32[1]{0}', space=sflag, size = 0x4, scoped, tag = 'scoped memory for tpu_custom_call.1']
    #allocation13 [shape = 'u8[512]{0}', space=vmem, size = 0x400, scoped, tag = 'input window, operand 6, single buffered']
    #allocation14 [shape = 'u8[65536]{0}', space=vmem, size = 0x10000, scoped, tag = 'input window, operand 7, single buffered']
    #allocation15 [shape = 's32[1]{0}', space=sflag, size = 0x4, scoped, tag = 'scoped memory for tpu_custom_call.1']
    #allocation16 [shape = 'u8[65536]{0}', space=vmem, size = 0x10000, scoped, tag = 'input window, operand 9, single buffered']
    #allocation17 [shape = 'u8[32768]{0}', space=vmem, size = 0x8000, scoped, tag = 'input window, operand 10, single buffered']
    #allocation18 [shape = 's32[1]{0}', space=sflag, size = 0x4, scoped, tag = 'scoped memory for tpu_custom_call.1']
    #allocation19 [shape = 'u8[32768]{0}', space=vmem, size = 0x8000, scoped, tag = 'input window, operand 12, single buffered']
    #allocation20 [shape = 'u8[65536]{0}', space=vmem, size = 0x10000, scoped, tag = 'input window, operand 14, single buffered']
    #allocation21 [shape = 's32[1]{0}', space=sflag, size = 0x4, scoped, tag = 'scoped memory for tpu_custom_call.1']
    #allocation22 [shape = 'u8[32768]{0}', space=vmem, size = 0x8000, scoped, tag = 'input window, operand 16, single buffered']
    #allocation23 [shape = 'u8[32768]{0}', space=vmem, size = 0x8000, scoped, tag = 'input window, operand 18, single buffered']
    #allocation24 [shape = 's32[1]{0}', space=sflag, size = 0x4, scoped, tag = 'scoped memory for tpu_custom_call.1']
    #allocation25 [shape = 'u8[65536]{0}', space=vmem, size = 0x10000, scoped, tag = 'input window, operand 20, single buffered']
    #allocation26 [shape = 'u8[8192]{0}', space=vmem, size = 0x2000, scoped, tag = 'output window, operand 0, single buffered']
    #allocation27 [shape = 'u8[4096]{0}', space=vmem, size = 0x1000, scoped, tag = 'output window, operand 1, single buffered']
    #allocation28 [shape = 's32[1]{0}', space=sflag, size = 0x4, scoped, tag = 'scoped memory for tpu_custom_call.1']
    %29 = vsyncpa [#allocation3], 0
    %30 = vsyncpa [#allocation6], 0
    %31 = vsyncpa [#allocation9], 0
    %32 = vsyncpa [#allocation12], 0
    %33 = vsyncpa [#allocation15], 0
    %34 = vsyncpa [#allocation18], 0
    %35 = vsyncpa [#allocation21], 0
    %36 = vsyncpa [#allocation24], 0
    %37 = vsyncpa [#allocation4], 0
    %38 = vsyncpa [#allocation28], 0
    // Predicated region
    $region2: #{tpu_custom_call.1} parent=1 // pred_check
      _
    $region3: #{tpu_custom_call.1} parent=1 // pred_check_branch
      %40 = sbr.rel (0) target = $region5
    $region4: #{tpu_custom_call.1} parent=1 // pred_region
      %42 = vsyncadd [#allocation3], 0
      %s44 = sshll.u32 %s0, 4
      %s45 = int_to_ptr.hbm [resolvable:$true] %s44
      %s46 = sshll.u32 [#allocation2], 4
      %s47 = int_to_ptr.vmem [resolvable:$true] %s46
      %49 = dma.hbm_to_vmem [thread:$0]  %s45, 256, %s47, [#allocation3]
    $region5: #{tpu_custom_call.1} parent=1 // pred_fallthru
      _
    // Predicated region
    $region6: #{tpu_custom_call.1} parent=1 // pred_check
      _
    $region7: #{tpu_custom_call.1} parent=1 // pred_check_branch
      %51 = sbr.rel (0) target = $region9
    $region8: #{tpu_custom_call.1} parent=1 // pred_region
      %53 = vsyncadd [#allocation6], 0
      %s55 = sshll.u32 %s1, 4
      %s56 = int_to_ptr.hbm [resolvable:$true] %s55
      %s57 = sshll.u32 [#allocation5], 4
      %s58 = int_to_ptr.vmem [resolvable:$true] %s57
      %60 = dma.hbm_to_vmem [thread:$0]  %s56, 128, %s58, [#allocation6]
    $region9: #{tpu_custom_call.1} parent=1 // pred_fallthru
      _
    // Predicated region
    $region10: #{tpu_custom_call.1} parent=1 // pred_check
      _
    $region11: #{tpu_custom_call.1} parent=1 // pred_check_branch
      %62 = sbr.rel (0) target = $region13
    $region12: #{tpu_custom_call.1} parent=1 // pred_region
      %64 = vsyncadd [#allocation6], 0
      %s66 = sshll.u32 %s2, 4
      %s67 = int_to_ptr.hbm [resolvable:$true] %s66
      %s68 = sshll.u32 [#allocation7], 4
      %s69 = int_to_ptr.vmem [resolvable:$true] %s68
      %71 = dma.hbm_to_vmem [thread:$0]  %s67, 128, %s69, [#allocation6]
    $region13: #{tpu_custom_call.1} parent=1 // pred_fallthru
      _
    // Predicated region
    $region14: #{tpu_custom_call.1} parent=1 // pred_check
      _
    $region15: #{tpu_custom_call.1} parent=1 // pred_check_branch
      %73 = sbr.rel (0) target = $region17
    $region16: #{tpu_custom_call.1} parent=1 // pred_region
      %75 = vsyncadd [#allocation9], 0
      %s76 = sshll.u32 %s3, 4
      %s77 = int_to_ptr.hbm [resolvable:$true] %s76
      %s78 = sshll.u32 [#allocation8], 4
      %s79 = int_to_ptr.vmem [resolvable:$true] %s78
      %84 = dma.hbm_to_vmem [thread:$0]  %s77, 2048, %s79, [#allocation9], 64, 64, 4
    $region17: #{tpu_custom_call.1} parent=1 // pred_fallthru
      _
    // Predicated region
    $region18: #{tpu_custom_call.1} parent=1 // pred_check
      _
    $region19: #{tpu_custom_call.1} parent=1 // pred_check_branch
      %86 = sbr.rel (0) target = $region21
    $region20: #{tpu_custom_call.1} parent=1 // pred_region
      %88 = vsyncadd [#allocation9], 0
      %s90 = sshll.u32 %s4, 4
      %s91 = int_to_ptr.hbm [resolvable:$true] %s90
      %s92 = sshll.u32 [#allocation10], 4
      %s93 = int_to_ptr.vmem [resolvable:$true] %s92
      %95 = dma.hbm_to_vmem [thread:$0]  %s91, 16, %s93, [#allocation9]
    $region21: #{tpu_custom_call.1} parent=1 // pred_fallthru
      _
    // Predicated region
    $region22: #{tpu_custom_call.1} parent=1 // pred_check
      _
    $region23: #{tpu_custom_call.1} parent=1 // pred_check_branch
      %97 = sbr.rel (0) target = $region25
    $region24: #{tpu_custom_call.1} parent=1 // pred_region
      %99 = vsyncadd [#allocation12], 0
      %s100 = sshll.u32 %s5, 4
      %s101 = int_to_ptr.hbm [resolvable:$true] %s100
      %s102 = sshll.u32 [#allocation11], 4
      %s103 = int_to_ptr.vmem [resolvable:$true] %s102
      %108 = dma.hbm_to_vmem [thread:$0]  %s101, 1024, %s103, [#allocation12], 64, 64, 4
    $region25: #{tpu_custom_call.1} parent=1 // pred_fallthru
      _
    // Predicated region
    $region26: #{tpu_custom_call.1} parent=1 // pred_check
      _
    $region27: #{tpu_custom_call.1} parent=1 // pred_check_branch
      %110 = sbr.rel (0) target = $region29
    $region28: #{tpu_custom_call.1} parent=1 // pred_region
      %112 = vsyncadd [#allocation12], 0
      %s114 = sshll.u32 %s6, 4
      %s115 = int_to_ptr.hbm [resolvable:$true] %s114
      %s116 = sshll.u32 [#allocation13], 4
      %s117 = int_to_ptr.vmem [resolvable:$true] %s116
      %119 = dma.hbm_to_vmem [thread:$0]  %s115, 16, %s117, [#allocation12]
    $region29: #{tpu_custom_call.1} parent=1 // pred_fallthru
      _
    // Predicated region
    $region30: #{tpu_custom_call.1} parent=1 // pred_check
      _
    $region31: #{tpu_custom_call.1} parent=1 // pred_check_branch
      %121 = sbr.rel (0) target = $region33
    $region32: #{tpu_custom_call.1} parent=1 // pred_region
      %123 = vsyncadd [#allocation15], 0
      %s124 = sshll.u32 %s7, 4
      %s125 = int_to_ptr.hbm [resolvable:$true] %s124
      %s126 = sshll.u32 [#allocation14], 4
      %s127 = int_to_ptr.vmem [resolvable:$true] %s126
      %132 = dma.hbm_to_vmem [thread:$0]  %s125, 2048, %s127, [#allocation15], 128, 128, 8
    $region33: #{tpu_custom_call.1} parent=1 // pred_fallthru
      _
    // Predicated region
    $region34: #{tpu_custom_call.1} parent=1 // pred_check
      _
    $region35: #{tpu_custom_call.1} parent=1 // pred_check_branch
      %134 = sbr.rel (0) target = $region37
    $region36: #{tpu_custom_call.1} parent=1 // pred_region
      _
    $region37: #{tpu_custom_call.1} parent=1 // pred_fallthru
      _
    // Predicated region
    $region38: #{tpu_custom_call.1} parent=1 // pred_check
      _
    $region39: #{tpu_custom_call.1} parent=1 // pred_check_branch
      %136 = sbr.rel (0) target = $region41
    $region40: #{tpu_custom_call.1} parent=1 // pred_region
      %138 = vsyncadd [#allocation15], 0
      %s139 = sshll.u32 %s9, 4
      %s140 = int_to_ptr.hbm [resolvable:$true] %s139
      %s141 = sshll.u32 [#allocation16], 4
      %s142 = int_to_ptr.vmem [resolvable:$true] %s141
      %147 = dma.hbm_to_vmem [thread:$0]  %s140, 2048, %s142, [#allocation15], 64, 64, 4
    $region41: #{tpu_custom_call.1} parent=1 // pred_fallthru
      _
    // Predicated region
    $region42: #{tpu_custom_call.1} parent=1 // pred_check
      _
    $region43: #{tpu_custom_call.1} parent=1 // pred_check_branch
      %149 = sbr.rel (0) target = $region45
    $region44: #{tpu_custom_call.1} parent=1 // pred_region
      %151 = vsyncadd [#allocation18], 0
      %s152 = sshll.u32 %s10, 4
      %s153 = int_to_ptr.hbm [resolvable:$true] %s152
      %s154 = sshll.u32 [#allocation17], 4
      %s155 = int_to_ptr.vmem [resolvable:$true] %s154
      %160 = dma.hbm_to_vmem [thread:$0]  %s153, 1024, %s155, [#allocation18], 64, 64, 4
    $region45: #{tpu_custom_call.1} parent=1 // pred_fallthru
      _
    // Predicated region
    $region46: #{tpu_custom_call.1} parent=1 // pred_check
      _
    $region47: #{tpu_custom_call.1} parent=1 // pred_check_branch
      %162 = sbr.rel (0) target = $region49
    $region48: #{tpu_custom_call.1} parent=1 // pred_region
      _
    $region49: #{tpu_custom_call.1} parent=1 // pred_fallthru
      _
    // Predicated region
    $region50: #{tpu_custom_call.1} parent=1 // pred_check
      _
    $region51: #{tpu_custom_call.1} parent=1 // pred_check_branch
      %164 = sbr.rel (0) target = $region53
    $region52: #{tpu_custom_call.1} parent=1 // pred_region
      %166 = vsyncadd [#allocation18], 0
      %s167 = sshll.u32 %s12, 4
      %s168 = int_to_ptr.hbm [resolvable:$true] %s167
      %s169 = sshll.u32 [#allocation19], 4
      %s170 = int_to_ptr.vmem [resolvable:$true] %s169
      %175 = dma.hbm_to_vmem [thread:$0]  %s168, 1024, %s170, [#allocation18], 64, 64, 4
    $region53: #{tpu_custom_call.1} parent=1 // pred_fallthru
      _
    // Predicated region
    $region54: #{tpu_custom_call.1} parent=1 // pred_check
      _
    $region55: #{tpu_custom_call.1} parent=1 // pred_check_branch
      %177 = sbr.rel (0) target = $region57
    $region56: #{tpu_custom_call.1} parent=1 // pred_region
      _
    $region57: #{tpu_custom_call.1} parent=1 // pred_fallthru
      _
    // Predicated region
    $region58: #{tpu_custom_call.1} parent=1 // pred_check
      _
    $region59: #{tpu_custom_call.1} parent=1 // pred_check_branch
      %179 = sbr.rel (0) target = $region61
    $region60: #{tpu_custom_call.1} parent=1 // pred_region
      %181 = vsyncadd [#allocation21], 0
      %s182 = sshll.u32 %s14, 4
      %s183 = int_to_ptr.hbm [resolvable:$true] %s182
      %s184 = sshll.u32 [#allocation20], 4
      %s185 = int_to_ptr.vmem [resolvable:$true] %s184
      %190 = dma.hbm_to_vmem [thread:$0]  %s183, 2048, %s185, [#allocation21], 128, 128, 8
    $region61: #{tpu_custom_call.1} parent=1 // pred_fallthru
      _
    // Predicated region
    $region62: #{tpu_custom_call.1} parent=1 // pred_check
      _
    $region63: #{tpu_custom_call.1} parent=1 // pred_check_branch
      %192 = sbr.rel (0) target = $region65
    $region64: #{tpu_custom_call.1} parent=1 // pred_region
      _
    $region65: #{tpu_custom_call.1} parent=1 // pred_fallthru
      _
    // Predicated region
    $region66: #{tpu_custom_call.1} parent=1 // pred_check
      _
    $region67: #{tpu_custom_call.1} parent=1 // pred_check_branch
      %194 = sbr.rel (0) target = $region69
    $region68: #{tpu_custom_call.1} parent=1 // pred_region
      %196 = vsyncadd [#allocation21], 0
      %s197 = sshll.u32 %s16, 4
      %s198 = int_to_ptr.hbm [resolvable:$true] %s197
      %s199 = sshll.u32 [#allocation22], 4
      %s200 = int_to_ptr.vmem [resolvable:$true] %s199
      %205 = dma.hbm_to_vmem [thread:$0]  %s198, 1024, %s200, [#allocation21], 64, 64, 4
    $region69: #{tpu_custom_call.1} parent=1 // pred_fallthru
      _
    // Predicated region
    $region70: #{tpu_custom_call.1} parent=1 // pred_check
      _
    $region71: #{tpu_custom_call.1} parent=1 // pred_check_branch
      %207 = sbr.rel (0) target = $region73
    $region72: #{tpu_custom_call.1} parent=1 // pred_region
      _
    $region73: #{tpu_custom_call.1} parent=1 // pred_fallthru
      _
    // Predicated region
    $region74: #{tpu_custom_call.1} parent=1 // pred_check
      _
    $region75: #{tpu_custom_call.1} parent=1 // pred_check_branch
      %209 = sbr.rel (0) target = $region77
    $region76: #{tpu_custom_call.1} parent=1 // pred_region
      %211 = vsyncadd [#allocation24], 0
      %s212 = sshll.u32 %s18, 4
      %s213 = int_to_ptr.hbm [resolvable:$true] %s212
      %s214 = sshll.u32 [#allocation23], 4
      %s215 = int_to_ptr.vmem [resolvable:$true] %s214
      %220 = dma.hbm_to_vmem [thread:$0]  %s213, 1024, %s215, [#allocation24], 64, 64, 4
    $region77: #{tpu_custom_call.1} parent=1 // pred_fallthru
      _
    // Predicated region
    $region78: #{tpu_custom_call.1} parent=1 // pred_check
      _
    $region79: #{tpu_custom_call.1} parent=1 // pred_check_branch
      %222 = sbr.rel (0) target = $region81
    $region80: #{tpu_custom_call.1} parent=1 // pred_region
      _
    $region81: #{tpu_custom_call.1} parent=1 // pred_fallthru
      _
    // Predicated region
    $region82: #{tpu_custom_call.1} parent=1 // pred_check
      _
    $region83: #{tpu_custom_call.1} parent=1 // pred_check_branch
      %224 = sbr.rel (0) target = $region85
    $region84: #{tpu_custom_call.1} parent=1 // pred_region
      %226 = vsyncadd [#allocation24], 0
      %s227 = sshll.u32 %s20, 4
      %s228 = int_to_ptr.hbm [resolvable:$true] %s227
      %s229 = sshll.u32 [#allocation25], 4
      %s230 = int_to_ptr.vmem [resolvable:$true] %s229
      %235 = dma.hbm_to_vmem [thread:$0]  %s228, 2048, %s230, [#allocation24], 128, 128, 8
    $region85: #{tpu_custom_call.1} parent=1 // pred_fallthru
      _
    // Predicated region
    $region86: #{tpu_custom_call.1} parent=1 // pred_check
      _
    $region87: #{tpu_custom_call.1} parent=1 // pred_check_branch
      %237 = sbr.rel (0) target = $region89
    $region88: #{tpu_custom_call.1} parent=1 // pred_region
      _
    $region89: #{tpu_custom_call.1} parent=1 // pred_fallthru
      _
    // Predicated region
    $region90: #{tpu_custom_call.1} parent=1 // pred_check
      _
    $region91: #{tpu_custom_call.1} parent=1 // pred_check_branch
      %239 = sbr.rel (0) target = $region93
    $region92: #{tpu_custom_call.1} parent=1 // pred_region
      %241 = dma.done [#allocation3], 256
    $region93: #{tpu_custom_call.1} parent=1 // pred_fallthru
      _
    // Predicated region
    $region94: #{tpu_custom_call.1} parent=1 // pred_check
      _
    $region95: #{tpu_custom_call.1} parent=1 // pred_check_branch
      %243 = sbr.rel (0) target = $region97
    $region96: #{tpu_custom_call.1} parent=1 // pred_region
      %245 = dma.done [#allocation6], 128
    $region97: #{tpu_custom_call.1} parent=1 // pred_fallthru
      _
    // Predicated region
    $region98: #{tpu_custom_call.1} parent=1 // pred_check
      _
    $region99: #{tpu_custom_call.1} parent=1 // pred_check_branch
      %247 = sbr.rel (0) target = $region101
    $region100: #{tpu_custom_call.1} parent=1 // pred_region
      %249 = dma.done [#allocation6], 128
    $region101: #{tpu_custom_call.1} parent=1 // pred_fallthru
      _
    // Predicated region
    $region102: #{tpu_custom_call.1} parent=1 // pred_check
      _
    $region103: #{tpu_custom_call.1} parent=1 // pred_check_branch
      %251 = sbr.rel (0) target = $region105
    $region104: #{tpu_custom_call.1} parent=1 // pred_region
      %253 = dma.done [#allocation9], 2048
    $region105: #{tpu_custom_call.1} parent=1 // pred_fallthru
      _
    // Predicated region
    $region106: #{tpu_custom_call.1} parent=1 // pred_check
      _
    $region107: #{tpu_custom_call.1} parent=1 // pred_check_branch
      %255 = sbr.rel (0) target = $region109
    $region108: #{tpu_custom_call.1} parent=1 // pred_region
      %257 = dma.done [#allocation9], 16
    $region109: #{tpu_custom_call.1} parent=1 // pred_fallthru
      _
    // Predicated region
    $region110: #{tpu_custom_call.1} parent=1 // pred_check
      _
    $region111: #{tpu_custom_call.1} parent=1 // pred_check_branch
      %259 = sbr.rel (0) target = $region113
    $region112: #{tpu_custom_call.1} parent=1 // pred_region
      %261 = dma.done [#allocation12], 1024
    $region113: #{tpu_custom_call.1} parent=1 // pred_fallthru
      _
    // Predicated region
    $region114: #{tpu_custom_call.1} parent=1 // pred_check
      _
    $region115: #{tpu_custom_call.1} parent=1 // pred_check_branch
      %263 = sbr.rel (0) target = $region117
    $region116: #{tpu_custom_call.1} parent=1 // pred_region
      %265 = dma.done [#allocation12], 16
    $region117: #{tpu_custom_call.1} parent=1 // pred_fallthru
      _
    // Predicated region
    $region118: #{tpu_custom_call.1} parent=1 // pred_check
      _
    $region119: #{tpu_custom_call.1} parent=1 // pred_check_branch
      %267 = sbr.rel (0) target = $region121
    $region120: #{tpu_custom_call.1} parent=1 // pred_region
      %269 = dma.done [#allocation15], 2048
    $region121: #{tpu_custom_call.1} parent=1 // pred_fallthru
      _
    // Predicated region
    $region122: #{tpu_custom_call.1} parent=1 // pred_check
      _
    $region123: #{tpu_custom_call.1} parent=1 // pred_check_branch
      %271 = sbr.rel (0) target = $region125
    $region124: #{tpu_custom_call.1} parent=1 // pred_region
      %273 = dma.done [#allocation15], 2048
    $region125: #{tpu_custom_call.1} parent=1 // pred_fallthru
      _
    // Predicated region
    $region126: #{tpu_custom_call.1} parent=1 // pred_check
      _
    $region127: #{tpu_custom_call.1} parent=1 // pred_check_branch
      %275 = sbr.rel (0) target = $region129
    $region128: #{tpu_custom_call.1} parent=1 // pred_region
      %277 = dma.done [#allocation18], 1024
    $region129: #{tpu_custom_call.1} parent=1 // pred_fallthru
      _
    // Predicated region
    $region130: #{tpu_custom_call.1} parent=1 // pred_check
      _
    $region131: #{tpu_custom_call.1} parent=1 // pred_check_branch
      %279 = sbr.rel (0) target = $region133
    $region132: #{tpu_custom_call.1} parent=1 // pred_region
      %281 = dma.done [#allocation18], 1024
    $region133: #{tpu_custom_call.1} parent=1 // pred_fallthru
      _
    // Predicated region
    $region134: #{tpu_custom_call.1} parent=1 // pred_check
      _
    $region135: #{tpu_custom_call.1} parent=1 // pred_check_branch
      %283 = sbr.rel (0) target = $region137
    $region136: #{tpu_custom_call.1} parent=1 // pred_region
      %285 = dma.done [#allocation21], 2048
    $region137: #{tpu_custom_call.1} parent=1 // pred_fallthru
      _
    // Predicated region
    $region138: #{tpu_custom_call.1} parent=1 // pred_check
      _
    $region139: #{tpu_custom_call.1} parent=1 // pred_check_branch
      %287 = sbr.rel (0) target = $region141
    $region140: #{tpu_custom_call.1} parent=1 // pred_region
      %289 = dma.done [#allocation21], 1024
    $region141: #{tpu_custom_call.1} parent=1 // pred_fallthru
      _
    // Predicated region
    $region142: #{tpu_custom_call.1} parent=1 // pred_check
      _
    $region143: #{tpu_custom_call.1} parent=1 // pred_check_branch
      %291 = sbr.rel (0) target = $region145
    $region144: #{tpu_custom_call.1} parent=1 // pred_region
      %293 = dma.done [#allocation24], 1024
    $region145: #{tpu_custom_call.1} parent=1 // pred_fallthru
      _
    // Predicated region
    $region146: #{tpu_custom_call.1} parent=1 // pred_check
      _
    $region147: #{tpu_custom_call.1} parent=1 // pred_check_branch
      %295 = sbr.rel (0) target = $region149
    $region148: #{tpu_custom_call.1} parent=1 // pred_region
      %297 = dma.done [#allocation24], 2048
    $region149: #{tpu_custom_call.1} parent=1 // pred_fallthru
      _
    %v298 = vld [vmem:[#allocation2] sm:$0xff]
    %v299 = vld [vmem:[#allocation2 + $0x8] sm:$0xff]
    %v300 = vld [vmem:[#allocation8] sm:$0xf]
    %v301 = vld [vmem:[#allocation8 + $0x4] sm:$0xf]
    %v302 = vld [vmem:[#allocation8 + $0x8] sm:$0xf]
    %v303 = vld [vmem:[#allocation8 + $0xc] sm:$0xf]
    %v304 = vld [vmem:[#allocation8 + $0x10] sm:$0xf]
    %v305 = vld [vmem:[#allocation8 + $0x14] sm:$0xf]
    %v306 = vld [vmem:[#allocation8 + $0x18] sm:$0xf]
    %v307 = vld [vmem:[#allocation8 + $0x1c] sm:$0xf]
    %v308 = vld [vmem:[#allocation8 + $0x20] sm:$0xf]
    %v309 = vld [vmem:[#allocation8 + $0x24] sm:$0xf]
    %v310 = vld [vmem:[#allocation8 + $0x28] sm:$0xf]
    %v311 = vld [vmem:[#allocation8 + $0x2c] sm:$0xf]
    %v312 = vld [vmem:[#allocation8 + $0x30] sm:$0xf]
    %v313 = vld [vmem:[#allocation8 + $0x34] sm:$0xf]
    %v314 = vld [vmem:[#allocation8 + $0x38] sm:$0xf]
    %v315 = vld [vmem:[#allocation8 + $0x3c] sm:$0xf]
    %v316 = vld [vmem:[#allocation8 + $0x40] sm:$0xf]
    %v317 = vld [vmem:[#allocation8 + $0x44] sm:$0xf]
    %v318 = vld [vmem:[#allocation8 + $0x48] sm:$0xf]
    %v319 = vld [vmem:[#allocation8 + $0x4c] sm:$0xf]
    %v320 = vld [vmem:[#allocation8 + $0x50] sm:$0xf]
    %v321 = vld [vmem:[#allocation8 + $0x54] sm:$0xf]
    %v322 = vld [vmem:[#allocation8 + $0x58] sm:$0xf]
    %v323 = vld [vmem:[#allocation8 + $0x5c] sm:$0xf]
    %v324 = vld [vmem:[#allocation8 + $0x60] sm:$0xf]
    %v325 = vld [vmem:[#allocation8 + $0x64] sm:$0xf]
    %v326 = vld [vmem:[#allocation8 + $0x68] sm:$0xf]
    %v327 = vld [vmem:[#allocation8 + $0x6c] sm:$0xf]
    %v328 = vld [vmem:[#allocation8 + $0x70] sm:$0xf]
    %v329 = vld [vmem:[#allocation8 + $0x74] sm:$0xf]
    %v330 = vld [vmem:[#allocation8 + $0x78] sm:$0xf]
    %v331 = vld [vmem:[#allocation8 + $0x7c] sm:$0xf]
    %v332 = vpack.c.bf16 %v298, %v298
    %v333 = vpack.c.bf16 %v299, %v299
    %v334 = vld [vmem:[#allocation10] sm:$0x1]
    %v336 = vperm.slane %v334, 0
    %v370 = vunpack.c.l.b16 %v300
    %v371 = vunpack.c.l.b16 %v301
    %v372 = vunpack.c.l.b16 %v302
    %v373 = vunpack.c.l.b16 %v303
    %v374 = vunpack.c.l.b16 %v304
    %v375 = vunpack.c.l.b16 %v305
    %v376 = vunpack.c.l.b16 %v306
    %v377 = vunpack.c.l.b16 %v307
    %v378 = vunpack.c.l.b16 %v308
    %v379 = vunpack.c.l.b16 %v309
    %v380 = vunpack.c.l.b16 %v310
    %v381 = vunpack.c.l.b16 %v311
    %v382 = vunpack.c.l.b16 %v312
    %v383 = vunpack.c.l.b16 %v313
    %v384 = vunpack.c.l.b16 %v314
    %v385 = vunpack.c.l.b16 %v315
    %v386 = vunpack.c.l.b16 %v316
    %v387 = vunpack.c.l.b16 %v317
    %v388 = vunpack.c.l.b16 %v318
    %v389 = vunpack.c.l.b16 %v319
    %v390 = vunpack.c.l.b16 %v320
    %v391 = vunpack.c.l.b16 %v321
    %v392 = vunpack.c.l.b16 %v322
    %v393 = vunpack.c.l.b16 %v323
    %v394 = vunpack.c.l.b16 %v324
    %v395 = vunpack.c.l.b16 %v325
    %v396 = vunpack.c.l.b16 %v326
    %v397 = vunpack.c.l.b16 %v327
    %v398 = vunpack.c.l.b16 %v328
    %v399 = vunpack.c.l.b16 %v329
    %v400 = vunpack.c.l.b16 %v330
    %v401 = vunpack.c.l.b16 %v331
    %v402 = vpack.c.b16 %v371, %v370
    %v403 = vpack.c.b16 %v373, %v372
    %v404 = vpack.c.b16 %v375, %v374
    %v405 = vpack.c.b16 %v377, %v376
    %v406 = vpack.c.b16 %v379, %v378
    %v407 = vpack.c.b16 %v381, %v380
    %v408 = vpack.c.b16 %v383, %v382
    %v409 = vpack.c.b16 %v385, %v384
    %v410 = vpack.c.b16 %v387, %v386
    %v411 = vpack.c.b16 %v389, %v388
    %v412 = vpack.c.b16 %v391, %v390
    %v413 = vpack.c.b16 %v393, %v392
    %v414 = vpack.c.b16 %v395, %v394
    %v415 = vpack.c.b16 %v397, %v396
    %v416 = vpack.c.b16 %v399, %v398
    %v417 = vpack.c.b16 %v401, %v400
    %434 = vmatpush.bf16.msra.mxu0 %v409
    %435 = vmatpush.bf16.msra.mxu0 %v408
    %436 = vmatpush.bf16.msra.mxu0 %v407
    %437 = vmatpush.bf16.msra.mxu0 %v406
    %438 = vmatpush.bf16.msra.mxu0 %v405
    %439 = vmatpush.bf16.msra.mxu0 %v404
    %440 = vmatpush.bf16.msra.mxu0 %v403
    %441 = vmatpush.bf16.msra.mxu0 %v402
    %442 = vmatmul.bf16.gmra.mxu0 %v332
    %v443 = vpop.f32.mrf.mxu0
    %v444 = vadd.f32 %v336, %v443
    %v445 = vpop.f32.mrf.mxu0
    %446 = vdwg.mxu0
    %447 = vmatpush.bf16.msra.mxu0 %v417
    %448 = vmatpush.bf16.msra.mxu0 %v416
    %449 = vmatpush.bf16.msra.mxu0 %v415
    %450 = vmatpush.bf16.msra.mxu0 %v414
    %451 = vmatpush.bf16.msra.mxu0 %v413
    %452 = vmatpush.bf16.msra.mxu0 %v412
    %453 = vmatpush.bf16.msra.mxu0 %v411
    %454 = vmatpush.bf16.msra.mxu0 %v410
    %455 = vmatmul.bf16.gmra.mxu0 %v333
    %v456 = vpop.f32.mrf.mxu0
    %v457 = vadd.f32 %v444, %v456
    %v458 = vpop.f32.mrf.mxu0
    %459 = vdwg.mxu0
    %v460 = vmax.f32 %v457, 0.0
    %v461 = vand.u32 2147483647, %v457
    %v462 = vsub.f32 0.0, %v461
    %v463 = vmul.f32 %v462, 1.442695
    %v464 = vpow.pop %v463
    %v465 = vadd.f32 %v464, 1.0
    %v466 = vlog2.pop %v465
    %v467 = vmul.f32 %v466, 0.6931472
    %v468 = vmul.f32 -0.5, %v464
    %v469 = vadd.f32 %v468, 1.0
    %v470 = vmul.f32 %v469, %v464
    %v471 = vand.u32 2147483647, %v464
    %vm472 = vcmp.lt.f32.partialorder %v471, 0.0004427343
    %v473 = vsel %vm472, %v470, %v467
    %v474 = vadd.f32 %v460, %v473
    %v475 = vld [vmem:[#allocation11] sm:$0xf]
    %v476 = vld [vmem:[#allocation11 + $0x4] sm:$0xf]
    %v477 = vld [vmem:[#allocation11 + $0x8] sm:$0xf]
    %v478 = vld [vmem:[#allocation11 + $0xc] sm:$0xf]
    %v479 = vld [vmem:[#allocation11 + $0x10] sm:$0xf]
    %v480 = vld [vmem:[#allocation11 + $0x14] sm:$0xf]
    %v481 = vld [vmem:[#allocation11 + $0x18] sm:$0xf]
    %v482 = vld [vmem:[#allocation11 + $0x1c] sm:$0xf]
    %v483 = vld [vmem:[#allocation11 + $0x20] sm:$0xf]
    %v484 = vld [vmem:[#allocation11 + $0x24] sm:$0xf]
    %v485 = vld [vmem:[#allocation11 + $0x28] sm:$0xf]
    %v486 = vld [vmem:[#allocation11 + $0x2c] sm:$0xf]
    %v487 = vld [vmem:[#allocation11 + $0x30] sm:$0xf]
    %v488 = vld [vmem:[#allocation11 + $0x34] sm:$0xf]
    %v489 = vld [vmem:[#allocation11 + $0x38] sm:$0xf]
    %v490 = vld [vmem:[#allocation11 + $0x3c] sm:$0xf]
    %v491 = vpack.c.bf16 %v474, %v474
    %v492 = vld [vmem:[#allocation13] sm:$0x1]
    %v494 = vperm.slane %v492, 0
    %v512 = vunpack.c.l.b16 %v475
    %v513 = vunpack.c.l.b16 %v476
    %v514 = vunpack.c.l.b16 %v477
    %v515 = vunpack.c.l.b16 %v478
    %v516 = vunpack.c.l.b16 %v479
    %v517 = vunpack.c.l.b16 %v480
    %v518 = vunpack.c.l.b16 %v481
    %v519 = vunpack.c.l.b16 %v482
    %v520 = vunpack.c.l.b16 %v483
    %v521 = vunpack.c.l.b16 %v484
    %v522 = vunpack.c.l.b16 %v485
    %v523 = vunpack.c.l.b16 %v486
    %v524 = vunpack.c.l.b16 %v487
    %v525 = vunpack.c.l.b16 %v488
    %v526 = vunpack.c.l.b16 %v489
    %v527 = vunpack.c.l.b16 %v490
    %v528 = vpack.c.b16 %v513, %v512
    %v529 = vpack.c.b16 %v515, %v514
    %v530 = vpack.c.b16 %v517, %v516
    %v531 = vpack.c.b16 %v519, %v518
    %v532 = vpack.c.b16 %v521, %v520
    %v533 = vpack.c.b16 %v523, %v522
    %v534 = vpack.c.b16 %v525, %v524
    %v535 = vpack.c.b16 %v527, %v526
    %544 = vmatpush.bf16.msra.mxu0 %v535
    %545 = vmatpush.bf16.msra.mxu0 %v534
    %546 = vmatpush.bf16.msra.mxu0 %v533
    %547 = vmatpush.bf16.msra.mxu0 %v532
    %548 = vmatpush.bf16.msra.mxu0 %v531
    %549 = vmatpush.bf16.msra.mxu0 %v530
    %550 = vmatpush.bf16.msra.mxu0 %v529
    %551 = vmatpush.bf16.msra.mxu0 %v528
    %552 = vmatmul.bf16.gmra.mxu0 %v491
    %v553 = vpop.f32.mrf.mxu0
    %v554 = vadd.f32 %v494, %v553
    %v555 = vpop.f32.mrf.mxu0
    %556 = vdwg.mxu0
    %v557 = vmax.f32 %v554, 0.0
    %v558 = vand.u32 2147483647, %v554
    %v559 = vsub.f32 0.0, %v558
    %v560 = vmul.f32 %v559, 1.442695
    %v561 = vpow.pop %v560
    %v562 = vadd.f32 %v561, 1.0
    %v563 = vlog2.pop %v562
    %v564 = vmul.f32 %v563, 0.6931472
    %v565 = vmul.f32 -0.5, %v561
    %v566 = vadd.f32 %v565, 1.0
    %v567 = vmul.f32 %v566, %v561
    %v568 = vand.u32 2147483647, %v561
    %vm569 = vcmp.lt.f32.partialorder %v568, 0.0004427343
    %v570 = vsel %vm569, %v567, %v564
    %v571 = vadd.f32 %v557, %v570
    %v572 = vld [vmem:[#allocation14] sm:$0xff]
    %v573 = vld [vmem:[#allocation14 + $0x8] sm:$0xff]
    %v574 = vld [vmem:[#allocation14 + $0x10] sm:$0xff]
    %v575 = vld [vmem:[#allocation14 + $0x18] sm:$0xff]
    %v576 = vld [vmem:[#allocation14 + $0x20] sm:$0xff]
    %v577 = vld [vmem:[#allocation14 + $0x28] sm:$0xff]
    %v578 = vld [vmem:[#allocation14 + $0x30] sm:$0xff]
    %v579 = vld [vmem:[#allocation14 + $0x38] sm:$0xff]
    %v580 = vld [vmem:[#allocation14 + $0x40] sm:$0xff]
    %v581 = vld [vmem:[#allocation14 + $0x48] sm:$0xff]
    %v582 = vld [vmem:[#allocation14 + $0x50] sm:$0xff]
    %v583 = vld [vmem:[#allocation14 + $0x58] sm:$0xff]
    %v584 = vld [vmem:[#allocation14 + $0x60] sm:$0xff]
    %v585 = vld [vmem:[#allocation14 + $0x68] sm:$0xff]
    %v586 = vld [vmem:[#allocation14 + $0x70] sm:$0xff]
    %v587 = vld [vmem:[#allocation14 + $0x78] sm:$0xff]
    %v588 = vpack.c.bf16 %v571, %v571
    %v589 = vld [vmem:[%s8] sm:$0x3]
    %v591 = vperm.slane %v589, 0
    %v592 = vperm.slane %v589, 1
    %v611 = vunpack.c.l.b16 %v572
    %v612 = vunpack.c.h.b16 %v572
    %v613 = vunpack.c.l.b16 %v573
    %v614 = vunpack.c.h.b16 %v573
    %v615 = vunpack.c.l.b16 %v574
    %v616 = vunpack.c.h.b16 %v574
    %v617 = vunpack.c.l.b16 %v575
    %v618 = vunpack.c.h.b16 %v575
    %v619 = vunpack.c.l.b16 %v576
    %v620 = vunpack.c.h.b16 %v576
    %v621 = vunpack.c.l.b16 %v577
    %v622 = vunpack.c.h.b16 %v577
    %v623 = vunpack.c.l.b16 %v578
    %v624 = vunpack.c.h.b16 %v578
    %v625 = vunpack.c.l.b16 %v579
    %v626 = vunpack.c.h.b16 %v579
    %v627 = vunpack.c.l.b16 %v580
    %v628 = vunpack.c.h.b16 %v580
    %v629 = vunpack.c.l.b16 %v581
    %v630 = vunpack.c.h.b16 %v581
    %v631 = vunpack.c.l.b16 %v582
    %v632 = vunpack.c.h.b16 %v582
    %v633 = vunpack.c.l.b16 %v583
    %v634 = vunpack.c.h.b16 %v583
    %v635 = vunpack.c.l.b16 %v584
    %v636 = vunpack.c.h.b16 %v584
    %v637 = vunpack.c.l.b16 %v585
    %v638 = vunpack.c.h.b16 %v585
    %v639 = vunpack.c.l.b16 %v586
    %v640 = vunpack.c.h.b16 %v586
    %v641 = vunpack.c.l.b16 %v587
    %v642 = vunpack.c.h.b16 %v587
    %v643 = vpack.c.b16 %v613, %v611
    %v644 = vpack.c.b16 %v614, %v612
    %v645 = vpack.c.b16 %v617, %v615
    %v646 = vpack.c.b16 %v618, %v616
    %v647 = vpack.c.b16 %v621, %v619
    %v648 = vpack.c.b16 %v622, %v620
    %v649 = vpack.c.b16 %v625, %v623
    %v650 = vpack.c.b16 %v626, %v624
    %v651 = vpack.c.b16 %v629, %v627
    %v652 = vpack.c.b16 %v630, %v628
    %v653 = vpack.c.b16 %v633, %v631
    %v654 = vpack.c.b16 %v634, %v632
    %v655 = vpack.c.b16 %v637, %v635
    %v656 = vpack.c.b16 %v638, %v636
    %v657 = vpack.c.b16 %v641, %v639
    %v658 = vpack.c.b16 %v642, %v640
    %675 = vmatpush.bf16.msra.mxu0 %v657
    %676 = vmatpush.bf16.msra.mxu0 %v655
    %677 = vmatpush.bf16.msra.mxu0 %v653
    %678 = vmatpush.bf16.msra.mxu0 %v651
    %679 = vmatpush.bf16.msra.mxu0 %v649
    %680 = vmatpush.bf16.msra.mxu0 %v647
    %681 = vmatpush.bf16.msra.mxu0 %v645
    %682 = vmatpush.bf16.msra.mxu0 %v643
    %683 = vmatmul.bf16.gmra.mxu0 %v588
    %v684 = vpop.f32.mrf.mxu0
    %v685 = vadd.f32 %v591, %v684
    %v686 = vpop.f32.mrf.mxu0
    %687 = vdwg.mxu0
    %688 = vmatpush.bf16.msra.mxu0 %v658
    %689 = vmatpush.bf16.msra.mxu0 %v656
    %690 = vmatpush.bf16.msra.mxu0 %v654
    %691 = vmatpush.bf16.msra.mxu0 %v652
    %692 = vmatpush.bf16.msra.mxu0 %v650
    %693 = vmatpush.bf16.msra.mxu0 %v648
    %694 = vmatpush.bf16.msra.mxu0 %v646
    %695 = vmatpush.bf16.msra.mxu0 %v644
    %696 = vmatmul.bf16.gmra.mxu0 %v588
    %v697 = vpop.f32.mrf.mxu0
    %v698 = vadd.f32 %v592, %v697
    %v699 = vpop.f32.mrf.mxu0
    %700 = vdwg.mxu0
    %v701 = vmul.f32 %v698, 0.5
    %v702 = vmul.f32 %v701, 1.442695
    %v703 = vpow.pop %v702
    %v704 = vld [vmem:[#allocation5] sm:$0xff]
    %v705 = vmul.f32 %v703, %v704
    %v706 = vadd.f32 %v685, %v705
    %v707 = vld [vmem:[#allocation16] sm:$0xf]
    %v708 = vld [vmem:[#allocation16 + $0x4] sm:$0xf]
    %v709 = vld [vmem:[#allocation16 + $0x8] sm:$0xf]
    %v710 = vld [vmem:[#allocation16 + $0xc] sm:$0xf]
    %v711 = vld [vmem:[#allocation16 + $0x10] sm:$0xf]
    %v712 = vld [vmem:[#allocation16 + $0x14] sm:$0xf]
    %v713 = vld [vmem:[#allocation16 + $0x18] sm:$0xf]
    %v714 = vld [vmem:[#allocation16 + $0x1c] sm:$0xf]
    %v715 = vld [vmem:[#allocation16 + $0x20] sm:$0xf]
    %v716 = vld [vmem:[#allocation16 + $0x24] sm:$0xf]
    %v717 = vld [vmem:[#allocation16 + $0x28] sm:$0xf]
    %v718 = vld [vmem:[#allocation16 + $0x2c] sm:$0xf]
    %v719 = vld [vmem:[#allocation16 + $0x30] sm:$0xf]
    %v720 = vld [vmem:[#allocation16 + $0x34] sm:$0xf]
    %v721 = vld [vmem:[#allocation16 + $0x38] sm:$0xf]
    %v722 = vld [vmem:[#allocation16 + $0x3c] sm:$0xf]
    %v723 = vld [vmem:[#allocation16 + $0x40] sm:$0xf]
    %v724 = vld [vmem:[#allocation16 + $0x44] sm:$0xf]
    %v725 = vld [vmem:[#allocation16 + $0x48] sm:$0xf]
    %v726 = vld [vmem:[#allocation16 + $0x4c] sm:$0xf]
    %v727 = vld [vmem:[#allocation16 + $0x50] sm:$0xf]
    %v728 = vld [vmem:[#allocation16 + $0x54] sm:$0xf]
    %v729 = vld [vmem:[#allocation16 + $0x58] sm:$0xf]
    %v730 = vld [vmem:[#allocation16 + $0x5c] sm:$0xf]
    %v731 = vld [vmem:[#allocation16 + $0x60] sm:$0xf]
    %v732 = vld [vmem:[#allocation16 + $0x64] sm:$0xf]
    %v733 = vld [vmem:[#allocation16 + $0x68] sm:$0xf]
    %v734 = vld [vmem:[#allocation16 + $0x6c] sm:$0xf]
    %v735 = vld [vmem:[#allocation16 + $0x70] sm:$0xf]
    %v736 = vld [vmem:[#allocation16 + $0x74] sm:$0xf]
    %v737 = vld [vmem:[#allocation16 + $0x78] sm:$0xf]
    %v738 = vld [vmem:[#allocation16 + $0x7c] sm:$0xf]
    %v739 = vld [vmem:[#allocation17] sm:$0xf]
    %v740 = vld [vmem:[#allocation17 + $0x4] sm:$0xf]
    %v741 = vld [vmem:[#allocation17 + $0x8] sm:$0xf]
    %v742 = vld [vmem:[#allocation17 + $0xc] sm:$0xf]
    %v743 = vld [vmem:[#allocation17 + $0x10] sm:$0xf]
    %v744 = vld [vmem:[#allocation17 + $0x14] sm:$0xf]
    %v745 = vld [vmem:[#allocation17 + $0x18] sm:$0xf]
    %v746 = vld [vmem:[#allocation17 + $0x1c] sm:$0xf]
    %v747 = vld [vmem:[#allocation17 + $0x20] sm:$0xf]
    %v748 = vld [vmem:[#allocation17 + $0x24] sm:$0xf]
    %v749 = vld [vmem:[#allocation17 + $0x28] sm:$0xf]
    %v750 = vld [vmem:[#allocation17 + $0x2c] sm:$0xf]
    %v751 = vld [vmem:[#allocation17 + $0x30] sm:$0xf]
    %v752 = vld [vmem:[#allocation17 + $0x34] sm:$0xf]
    %v753 = vld [vmem:[#allocation17 + $0x38] sm:$0xf]
    %v754 = vld [vmem:[#allocation17 + $0x3c] sm:$0xf]
    %v755 = vpack.c.bf16 %v706, %v706
    %v772 = vunpack.c.l.b16 %v739
    %v773 = vunpack.c.l.b16 %v740
    %v774 = vunpack.c.l.b16 %v741
    %v775 = vunpack.c.l.b16 %v742
    %v776 = vunpack.c.l.b16 %v743
    %v777 = vunpack.c.l.b16 %v744
    %v778 = vunpack.c.l.b16 %v745
    %v779 = vunpack.c.l.b16 %v746
    %v780 = vunpack.c.l.b16 %v747
    %v781 = vunpack.c.l.b16 %v748
    %v782 = vunpack.c.l.b16 %v749
    %v783 = vunpack.c.l.b16 %v750
    %v784 = vunpack.c.l.b16 %v751
    %v785 = vunpack.c.l.b16 %v752
    %v786 = vunpack.c.l.b16 %v753
    %v787 = vunpack.c.l.b16 %v754
    %v788 = vpack.c.b16 %v773, %v772
    %v789 = vpack.c.b16 %v775, %v774
    %v790 = vpack.c.b16 %v777, %v776
    %v791 = vpack.c.b16 %v779, %v778
    %v792 = vpack.c.b16 %v781, %v780
    %v793 = vpack.c.b16 %v783, %v782
    %v794 = vpack.c.b16 %v785, %v784
    %v795 = vpack.c.b16 %v787, %v786
    %804 = vmatpush.bf16.msra.mxu0 %v795
    %805 = vmatpush.bf16.msra.mxu0 %v794
    %806 = vmatpush.bf16.msra.mxu0 %v793
    %807 = vmatpush.bf16.msra.mxu0 %v792
    %808 = vmatpush.bf16.msra.mxu0 %v791
    %809 = vmatpush.bf16.msra.mxu0 %v790
    %810 = vmatpush.bf16.msra.mxu0 %v789
    %811 = vmatpush.bf16.msra.mxu0 %v788
    %812 = vmatmul.bf16.gmra.mxu0 %v755
    %v813 = vpop.f32.mrf.mxu0
    %v814 = vadd.f32 0.0, %v813
    %v815 = vpop.f32.mrf.mxu0
    %816 = vdwg.mxu0
    %v849 = vunpack.c.l.b16 %v707
    %v850 = vunpack.c.l.b16 %v708
    %v851 = vunpack.c.l.b16 %v709
    %v852 = vunpack.c.l.b16 %v710
    %v853 = vunpack.c.l.b16 %v711
    %v854 = vunpack.c.l.b16 %v712
    %v855 = vunpack.c.l.b16 %v713
    %v856 = vunpack.c.l.b16 %v714
    %v857 = vunpack.c.l.b16 %v715
    %v858 = vunpack.c.l.b16 %v716
    %v859 = vunpack.c.l.b16 %v717
    %v860 = vunpack.c.l.b16 %v718
    %v861 = vunpack.c.l.b16 %v719
    %v862 = vunpack.c.l.b16 %v720
    %v863 = vunpack.c.l.b16 %v721
    %v864 = vunpack.c.l.b16 %v722
    %v865 = vunpack.c.l.b16 %v723
    %v866 = vunpack.c.l.b16 %v724
    %v867 = vunpack.c.l.b16 %v725
    %v868 = vunpack.c.l.b16 %v726
    %v869 = vunpack.c.l.b16 %v727
    %v870 = vunpack.c.l.b16 %v728
    %v871 = vunpack.c.l.b16 %v729
    %v872 = vunpack.c.l.b16 %v730
    %v873 = vunpack.c.l.b16 %v731
    %v874 = vunpack.c.l.b16 %v732
    %v875 = vunpack.c.l.b16 %v733
    %v876 = vunpack.c.l.b16 %v734
    %v877 = vunpack.c.l.b16 %v735
    %v878 = vunpack.c.l.b16 %v736
    %v879 = vunpack.c.l.b16 %v737
    %v880 = vunpack.c.l.b16 %v738
    %v881 = vpack.c.b16 %v850, %v849
    %v882 = vpack.c.b16 %v852, %v851
    %v883 = vpack.c.b16 %v854, %v853
    %v884 = vpack.c.b16 %v856, %v855
    %v885 = vpack.c.b16 %v858, %v857
    %v886 = vpack.c.b16 %v860, %v859
    %v887 = vpack.c.b16 %v862, %v861
    %v888 = vpack.c.b16 %v864, %v863
    %v889 = vpack.c.b16 %v866, %v865
    %v890 = vpack.c.b16 %v868, %v867
    %v891 = vpack.c.b16 %v870, %v869
    %v892 = vpack.c.b16 %v872, %v871
    %v893 = vpack.c.b16 %v874, %v873
    %v894 = vpack.c.b16 %v876, %v875
    %v895 = vpack.c.b16 %v878, %v877
    %v896 = vpack.c.b16 %v880, %v879
    %913 = vmatpush.bf16.msra.mxu0 %v888
    %914 = vmatpush.bf16.msra.mxu0 %v887
    %915 = vmatpush.bf16.msra.mxu0 %v886
    %916 = vmatpush.bf16.msra.mxu0 %v885
    %917 = vmatpush.bf16.msra.mxu0 %v884
    %918 = vmatpush.bf16.msra.mxu0 %v883
    %919 = vmatpush.bf16.msra.mxu0 %v882
    %920 = vmatpush.bf16.msra.mxu0 %v881
    %921 = vmatmul.bf16.gmra.mxu0 %v332
    %v922 = vpop.f32.mrf.mxu0
    %v923 = vadd.f32 %v814, %v922
    %v924 = vpop.f32.mrf.mxu0
    %925 = vdwg.mxu0
    %926 = vmatpush.bf16.msra.mxu0 %v896
    %927 = vmatpush.bf16.msra.mxu0 %v895
    %928 = vmatpush.bf16.msra.mxu0 %v894
    %929 = vmatpush.bf16.msra.mxu0 %v893
    %930 = vmatpush.bf16.msra.mxu0 %v892
    %931 = vmatpush.bf16.msra.mxu0 %v891
    %932 = vmatpush.bf16.msra.mxu0 %v890
    %933 = vmatpush.bf16.msra.mxu0 %v889
    %934 = vmatmul.bf16.gmra.mxu0 %v333
    %v935 = vpop.f32.mrf.mxu0
    %v936 = vadd.f32 %v923, %v935
    %v937 = vpop.f32.mrf.mxu0
    %938 = vdwg.mxu0
    %v939 = vld [vmem:[%s11] sm:$0x1]
    %v941 = vperm.slane %v939, 0
    %v943 = vadd.f32 %v936, %v941
    %v944 = vmax.f32 %v943, 0.0
    %v945 = vand.u32 2147483647, %v943
    %v946 = vsub.f32 0.0, %v945
    %v947 = vmul.f32 %v946, 1.442695
    %v948 = vpow.pop %v947
    %v949 = vadd.f32 %v948, 1.0
    %v950 = vlog2.pop %v949
    %v951 = vmul.f32 %v950, 0.6931472
    %v952 = vmul.f32 -0.5, %v948
    %v953 = vadd.f32 %v952, 1.0
    %v954 = vmul.f32 %v953, %v948
    %v955 = vand.u32 2147483647, %v948
    %vm956 = vcmp.lt.f32.partialorder %v955, 0.0004427343
    %v957 = vsel %vm956, %v954, %v951
    %v958 = vadd.f32 %v944, %v957
    %v959 = vld [vmem:[#allocation19] sm:$0xf]
    %v960 = vld [vmem:[#allocation19 + $0x4] sm:$0xf]
    %v961 = vld [vmem:[#allocation19 + $0x8] sm:$0xf]
    %v962 = vld [vmem:[#allocation19 + $0xc] sm:$0xf]
    %v963 = vld [vmem:[#allocation19 + $0x10] sm:$0xf]
    %v964 = vld [vmem:[#allocation19 + $0x14] sm:$0xf]
    %v965 = vld [vmem:[#allocation19 + $0x18] sm:$0xf]
    %v966 = vld [vmem:[#allocation19 + $0x1c] sm:$0xf]
    %v967 = vld [vmem:[#allocation19 + $0x20] sm:$0xf]
    %v968 = vld [vmem:[#allocation19 + $0x24] sm:$0xf]
    %v969 = vld [vmem:[#allocation19 + $0x28] sm:$0xf]
    %v970 = vld [vmem:[#allocation19 + $0x2c] sm:$0xf]
    %v971 = vld [vmem:[#allocation19 + $0x30] sm:$0xf]
    %v972 = vld [vmem:[#allocation19 + $0x34] sm:$0xf]
    %v973 = vld [vmem:[#allocation19 + $0x38] sm:$0xf]
    %v974 = vld [vmem:[#allocation19 + $0x3c] sm:$0xf]
    %v975 = vpack.c.bf16 %v958, %v958
    %v976 = vld [vmem:[%s13] sm:$0x1]
    %v978 = vperm.slane %v976, 0
    %v996 = vunpack.c.l.b16 %v959
    %v997 = vunpack.c.l.b16 %v960
    %v998 = vunpack.c.l.b16 %v961
    %v999 = vunpack.c.l.b16 %v962
    %v1000 = vunpack.c.l.b16 %v963
    %v1001 = vunpack.c.l.b16 %v964
    %v1002 = vunpack.c.l.b16 %v965
    %v1003 = vunpack.c.l.b16 %v966
    %v1004 = vunpack.c.l.b16 %v967
    %v1005 = vunpack.c.l.b16 %v968
    %v1006 = vunpack.c.l.b16 %v969
    %v1007 = vunpack.c.l.b16 %v970
    %v1008 = vunpack.c.l.b16 %v971
    %v1009 = vunpack.c.l.b16 %v972
    %v1010 = vunpack.c.l.b16 %v973
    %v1011 = vunpack.c.l.b16 %v974
    %v1012 = vpack.c.b16 %v997, %v996
    %v1013 = vpack.c.b16 %v999, %v998
    %v1014 = vpack.c.b16 %v1001, %v1000
    %v1015 = vpack.c.b16 %v1003, %v1002
    %v1016 = vpack.c.b16 %v1005, %v1004
    %v1017 = vpack.c.b16 %v1007, %v1006
    %v1018 = vpack.c.b16 %v1009, %v1008
    %v1019 = vpack.c.b16 %v1011, %v1010
    %1028 = vmatpush.bf16.msra.mxu0 %v1019
    %1029 = vmatpush.bf16.msra.mxu0 %v1018
    %1030 = vmatpush.bf16.msra.mxu0 %v1017
    %1031 = vmatpush.bf16.msra.mxu0 %v1016
    %1032 = vmatpush.bf16.msra.mxu0 %v1015
    %1033 = vmatpush.bf16.msra.mxu0 %v1014
    %1034 = vmatpush.bf16.msra.mxu0 %v1013
    %1035 = vmatpush.bf16.msra.mxu0 %v1012
    %1036 = vmatmul.bf16.gmra.mxu0 %v975
    %v1037 = vpop.f32.mrf.mxu0
    %v1038 = vadd.f32 %v978, %v1037
    %v1039 = vpop.f32.mrf.mxu0
    %1040 = vdwg.mxu0
    %v1041 = vmax.f32 %v1038, 0.0
    %v1042 = vand.u32 2147483647, %v1038
    %v1043 = vsub.f32 0.0, %v1042
    %v1044 = vmul.f32 %v1043, 1.442695
    %v1045 = vpow.pop %v1044
    %v1046 = vadd.f32 %v1045, 1.0
    %v1047 = vlog2.pop %v1046
    %v1048 = vmul.f32 %v1047, 0.6931472
    %v1049 = vmul.f32 -0.5, %v1045
    %v1050 = vadd.f32 %v1049, 1.0
    %v1051 = vmul.f32 %v1050, %v1045
    %v1052 = vand.u32 2147483647, %v1045
    %vm1053 = vcmp.lt.f32.partialorder %v1052, 0.0004427343
    %v1054 = vsel %vm1053, %v1051, %v1048
    %v1055 = vadd.f32 %v1041, %v1054
    %v1056 = vld [vmem:[#allocation20] sm:$0xff]
    %v1057 = vld [vmem:[#allocation20 + $0x8] sm:$0xff]
    %v1058 = vld [vmem:[#allocation20 + $0x10] sm:$0xff]
    %v1059 = vld [vmem:[#allocation20 + $0x18] sm:$0xff]
    %v1060 = vld [vmem:[#allocation20 + $0x20] sm:$0xff]
    %v1061 = vld [vmem:[#allocation20 + $0x28] sm:$0xff]
    %v1062 = vld [vmem:[#allocation20 + $0x30] sm:$0xff]
    %v1063 = vld [vmem:[#allocation20 + $0x38] sm:$0xff]
    %v1064 = vld [vmem:[#allocation20 + $0x40] sm:$0xff]
    %v1065 = vld [vmem:[#allocation20 + $0x48] sm:$0xff]
    %v1066 = vld [vmem:[#allocation20 + $0x50] sm:$0xff]
    %v1067 = vld [vmem:[#allocation20 + $0x58] sm:$0xff]
    %v1068 = vld [vmem:[#allocation20 + $0x60] sm:$0xff]
    %v1069 = vld [vmem:[#allocation20 + $0x68] sm:$0xff]
    %v1070 = vld [vmem:[#allocation20 + $0x70] sm:$0xff]
    %v1071 = vld [vmem:[#allocation20 + $0x78] sm:$0xff]
    %v1072 = vpack.c.bf16 %v1055, %v1055
    %v1073 = vld [vmem:[%s15] sm:$0x3]
    %v1075 = vperm.slane %v1073, 0
    %v1076 = vperm.slane %v1073, 1
    %v1095 = vunpack.c.l.b16 %v1056
    %v1096 = vunpack.c.h.b16 %v1056
    %v1097 = vunpack.c.l.b16 %v1057
    %v1098 = vunpack.c.h.b16 %v1057
    %v1099 = vunpack.c.l.b16 %v1058
    %v1100 = vunpack.c.h.b16 %v1058
    %v1101 = vunpack.c.l.b16 %v1059
    %v1102 = vunpack.c.h.b16 %v1059
    %v1103 = vunpack.c.l.b16 %v1060
    %v1104 = vunpack.c.h.b16 %v1060
    %v1105 = vunpack.c.l.b16 %v1061
    %v1106 = vunpack.c.h.b16 %v1061
    %v1107 = vunpack.c.l.b16 %v1062
    %v1108 = vunpack.c.h.b16 %v1062
    %v1109 = vunpack.c.l.b16 %v1063
    %v1110 = vunpack.c.h.b16 %v1063
    %v1111 = vunpack.c.l.b16 %v1064
    %v1112 = vunpack.c.h.b16 %v1064
    %v1113 = vunpack.c.l.b16 %v1065
    %v1114 = vunpack.c.h.b16 %v1065
    %v1115 = vunpack.c.l.b16 %v1066
    %v1116 = vunpack.c.h.b16 %v1066
    %v1117 = vunpack.c.l.b16 %v1067
    %v1118 = vunpack.c.h.b16 %v1067
    %v1119 = vunpack.c.l.b16 %v1068
    %v1120 = vunpack.c.h.b16 %v1068
    %v1121 = vunpack.c.l.b16 %v1069
    %v1122 = vunpack.c.h.b16 %v1069
    %v1123 = vunpack.c.l.b16 %v1070
    %v1124 = vunpack.c.h.b16 %v1070
    %v1125 = vunpack.c.l.b16 %v1071
    %v1126 = vunpack.c.h.b16 %v1071
    %v1127 = vpack.c.b16 %v1097, %v1095
    %v1128 = vpack.c.b16 %v1098, %v1096
    %v1129 = vpack.c.b16 %v1101, %v1099
    %v1130 = vpack.c.b16 %v1102, %v1100
    %v1131 = vpack.c.b16 %v1105, %v1103
    %v1132 = vpack.c.b16 %v1106, %v1104
    %v1133 = vpack.c.b16 %v1109, %v1107
    %v1134 = vpack.c.b16 %v1110, %v1108
    %v1135 = vpack.c.b16 %v1113, %v1111
    %v1136 = vpack.c.b16 %v1114, %v1112
    %v1137 = vpack.c.b16 %v1117, %v1115
    %v1138 = vpack.c.b16 %v1118, %v1116
    %v1139 = vpack.c.b16 %v1121, %v1119
    %v1140 = vpack.c.b16 %v1122, %v1120
    %v1141 = vpack.c.b16 %v1125, %v1123
    %v1142 = vpack.c.b16 %v1126, %v1124
    %1159 = vmatpush.bf16.msra.mxu0 %v1141
    %1160 = vmatpush.bf16.msra.mxu0 %v1139
    %1161 = vmatpush.bf16.msra.mxu0 %v1137
    %1162 = vmatpush.bf16.msra.mxu0 %v1135
    %1163 = vmatpush.bf16.msra.mxu0 %v1133
    %1164 = vmatpush.bf16.msra.mxu0 %v1131
    %1165 = vmatpush.bf16.msra.mxu0 %v1129
    %1166 = vmatpush.bf16.msra.mxu0 %v1127
    %1167 = vmatmul.bf16.gmra.mxu0 %v1072
    %v1168 = vpop.f32.mrf.mxu0
    %v1169 = vadd.f32 %v1075, %v1168
    %v1170 = vpop.f32.mrf.mxu0
    %1171 = vdwg.mxu0
    %1172 = vmatpush.bf16.msra.mxu0 %v1142
    %1173 = vmatpush.bf16.msra.mxu0 %v1140
    %1174 = vmatpush.bf16.msra.mxu0 %v1138
    %1175 = vmatpush.bf16.msra.mxu0 %v1136
    %1176 = vmatpush.bf16.msra.mxu0 %v1134
    %1177 = vmatpush.bf16.msra.mxu0 %v1132
    %1178 = vmatpush.bf16.msra.mxu0 %v1130
    %1179 = vmatpush.bf16.msra.mxu0 %v1128
    %1180 = vmatmul.bf16.gmra.mxu0 %v1072
    %v1181 = vpop.f32.mrf.mxu0
    %v1182 = vadd.f32 %v1076, %v1181
    %v1183 = vpop.f32.mrf.mxu0
    %1184 = vdwg.mxu0
    %v1185 = vmul.f32 %v1182, 0.5
    %v1186 = vmul.f32 %v1185, 1.442695
    %v1187 = vpow.pop %v1186
    %v1188 = vld [vmem:[#allocation7] sm:$0xff]
    %v1189 = vmul.f32 %v1187, %v1188
    %v1190 = vadd.f32 %v1169, %v1189
    %v1191 = vld [vmem:[#allocation22] sm:$0xf]
    %v1192 = vld [vmem:[#allocation22 + $0x4] sm:$0xf]
    %v1193 = vld [vmem:[#allocation22 + $0x8] sm:$0xf]
    %v1194 = vld [vmem:[#allocation22 + $0xc] sm:$0xf]
    %v1195 = vld [vmem:[#allocation22 + $0x10] sm:$0xf]
    %v1196 = vld [vmem:[#allocation22 + $0x14] sm:$0xf]
    %v1197 = vld [vmem:[#allocation22 + $0x18] sm:$0xf]
    %v1198 = vld [vmem:[#allocation22 + $0x1c] sm:$0xf]
    %v1199 = vld [vmem:[#allocation22 + $0x20] sm:$0xf]
    %v1200 = vld [vmem:[#allocation22 + $0x24] sm:$0xf]
    %v1201 = vld [vmem:[#allocation22 + $0x28] sm:$0xf]
    %v1202 = vld [vmem:[#allocation22 + $0x2c] sm:$0xf]
    %v1203 = vld [vmem:[#allocation22 + $0x30] sm:$0xf]
    %v1204 = vld [vmem:[#allocation22 + $0x34] sm:$0xf]
    %v1205 = vld [vmem:[#allocation22 + $0x38] sm:$0xf]
    %v1206 = vld [vmem:[#allocation22 + $0x3c] sm:$0xf]
    %v1207 = vpack.c.bf16 %v1190, %v1190
    %v1208 = vld [vmem:[%s17] sm:$0x1]
    %v1210 = vperm.slane %v1208, 0
    %v1228 = vunpack.c.l.b16 %v1191
    %v1229 = vunpack.c.l.b16 %v1192
    %v1230 = vunpack.c.l.b16 %v1193
    %v1231 = vunpack.c.l.b16 %v1194
    %v1232 = vunpack.c.l.b16 %v1195
    %v1233 = vunpack.c.l.b16 %v1196
    %v1234 = vunpack.c.l.b16 %v1197
    %v1235 = vunpack.c.l.b16 %v1198
    %v1236 = vunpack.c.l.b16 %v1199
    %v1237 = vunpack.c.l.b16 %v1200
    %v1238 = vunpack.c.l.b16 %v1201
    %v1239 = vunpack.c.l.b16 %v1202
    %v1240 = vunpack.c.l.b16 %v1203
    %v1241 = vunpack.c.l.b16 %v1204
    %v1242 = vunpack.c.l.b16 %v1205
    %v1243 = vunpack.c.l.b16 %v1206
    %v1244 = vpack.c.b16 %v1229, %v1228
    %v1245 = vpack.c.b16 %v1231, %v1230
    %v1246 = vpack.c.b16 %v1233, %v1232
    %v1247 = vpack.c.b16 %v1235, %v1234
    %v1248 = vpack.c.b16 %v1237, %v1236
    %v1249 = vpack.c.b16 %v1239, %v1238
    %v1250 = vpack.c.b16 %v1241, %v1240
    %v1251 = vpack.c.b16 %v1243, %v1242
    %1260 = vmatpush.bf16.msra.mxu0 %v1251
    %1261 = vmatpush.bf16.msra.mxu0 %v1250
    %1262 = vmatpush.bf16.msra.mxu0 %v1249
    %1263 = vmatpush.bf16.msra.mxu0 %v1248
    %1264 = vmatpush.bf16.msra.mxu0 %v1247
    %1265 = vmatpush.bf16.msra.mxu0 %v1246
    %1266 = vmatpush.bf16.msra.mxu0 %v1245
    %1267 = vmatpush.bf16.msra.mxu0 %v1244
    %1268 = vmatmul.bf16.gmra.mxu0 %v1207
    %v1269 = vpop.f32.mrf.mxu0
    %v1270 = vadd.f32 %v1210, %v1269
    %v1271 = vpop.f32.mrf.mxu0
    %1272 = vdwg.mxu0
    %v1273 = vmax.f32 %v1270, 0.0
    %v1274 = vand.u32 2147483647, %v1270
    %v1275 = vsub.f32 0.0, %v1274
    %v1276 = vmul.f32 %v1275, 1.442695
    %v1277 = vpow.pop %v1276
    %v1278 = vadd.f32 %v1277, 1.0
    %v1279 = vlog2.pop %v1278
    %v1280 = vmul.f32 %v1279, 0.6931472
    %v1281 = vmul.f32 -0.5, %v1277
    %v1282 = vadd.f32 %v1281, 1.0
    %v1283 = vmul.f32 %v1282, %v1277
    %v1284 = vand.u32 2147483647, %v1277
    %vm1285 = vcmp.lt.f32.partialorder %v1284, 0.0004427343
    %v1286 = vsel %vm1285, %v1283, %v1280
    %v1287 = vadd.f32 %v1273, %v1286
    %v1288 = vld [vmem:[#allocation23] sm:$0xf]
    %v1289 = vld [vmem:[#allocation23 + $0x4] sm:$0xf]
    %v1290 = vld [vmem:[#allocation23 + $0x8] sm:$0xf]
    %v1291 = vld [vmem:[#allocation23 + $0xc] sm:$0xf]
    %v1292 = vld [vmem:[#allocation23 + $0x10] sm:$0xf]
    %v1293 = vld [vmem:[#allocation23 + $0x14] sm:$0xf]
    %v1294 = vld [vmem:[#allocation23 + $0x18] sm:$0xf]
    %v1295 = vld [vmem:[#allocation23 + $0x1c] sm:$0xf]
    %v1296 = vld [vmem:[#allocation23 + $0x20] sm:$0xf]
    %v1297 = vld [vmem:[#allocation23 + $0x24] sm:$0xf]
    %v1298 = vld [vmem:[#allocation23 + $0x28] sm:$0xf]
    %v1299 = vld [vmem:[#allocation23 + $0x2c] sm:$0xf]
    %v1300 = vld [vmem:[#allocation23 + $0x30] sm:$0xf]
    %v1301 = vld [vmem:[#allocation23 + $0x34] sm:$0xf]
    %v1302 = vld [vmem:[#allocation23 + $0x38] sm:$0xf]
    %v1303 = vld [vmem:[#allocation23 + $0x3c] sm:$0xf]
    %v1304 = vpack.c.bf16 %v1287, %v1287
    %v1305 = vld [vmem:[%s19] sm:$0x1]
    %v1307 = vperm.slane %v1305, 0
    %v1325 = vunpack.c.l.b16 %v1288
    %v1326 = vunpack.c.l.b16 %v1289
    %v1327 = vunpack.c.l.b16 %v1290
    %v1328 = vunpack.c.l.b16 %v1291
    %v1329 = vunpack.c.l.b16 %v1292
    %v1330 = vunpack.c.l.b16 %v1293
    %v1331 = vunpack.c.l.b16 %v1294
    %v1332 = vunpack.c.l.b16 %v1295
    %v1333 = vunpack.c.l.b16 %v1296
    %v1334 = vunpack.c.l.b16 %v1297
    %v1335 = vunpack.c.l.b16 %v1298
    %v1336 = vunpack.c.l.b16 %v1299
    %v1337 = vunpack.c.l.b16 %v1300
    %v1338 = vunpack.c.l.b16 %v1301
    %v1339 = vunpack.c.l.b16 %v1302
    %v1340 = vunpack.c.l.b16 %v1303
    %v1341 = vpack.c.b16 %v1326, %v1325
    %v1342 = vpack.c.b16 %v1328, %v1327
    %v1343 = vpack.c.b16 %v1330, %v1329
    %v1344 = vpack.c.b16 %v1332, %v1331
    %v1345 = vpack.c.b16 %v1334, %v1333
    %v1346 = vpack.c.b16 %v1336, %v1335
    %v1347 = vpack.c.b16 %v1338, %v1337
    %v1348 = vpack.c.b16 %v1340, %v1339
    %1357 = vmatpush.bf16.msra.mxu0 %v1348
    %1358 = vmatpush.bf16.msra.mxu0 %v1347
    %1359 = vmatpush.bf16.msra.mxu0 %v1346
    %1360 = vmatpush.bf16.msra.mxu0 %v1345
    %1361 = vmatpush.bf16.msra.mxu0 %v1344
    %1362 = vmatpush.bf16.msra.mxu0 %v1343
    %1363 = vmatpush.bf16.msra.mxu0 %v1342
    %1364 = vmatpush.bf16.msra.mxu0 %v1341
    %1365 = vmatmul.bf16.gmra.mxu0 %v1304
    %v1366 = vpop.f32.mrf.mxu0
    %v1367 = vadd.f32 %v1307, %v1366
    %v1368 = vpop.f32.mrf.mxu0
    %1369 = vdwg.mxu0
    %v1370 = vmax.f32 %v1367, 0.0
    %v1371 = vand.u32 2147483647, %v1367
    %v1372 = vsub.f32 0.0, %v1371
    %v1373 = vmul.f32 %v1372, 1.442695
    %v1374 = vpow.pop %v1373
    %v1375 = vadd.f32 %v1374, 1.0
    %v1376 = vlog2.pop %v1375
    %v1377 = vmul.f32 %v1376, 0.6931472
    %v1378 = vmul.f32 -0.5, %v1374
    %v1379 = vadd.f32 %v1378, 1.0
    %v1380 = vmul.f32 %v1379, %v1374
    %v1381 = vand.u32 2147483647, %v1374
    %vm1382 = vcmp.lt.f32.partialorder %v1381, 0.0004427343
    %v1383 = vsel %vm1382, %v1380, %v1377
    %v1384 = vadd.f32 %v1370, %v1383
    %v1385 = vld [vmem:[#allocation25] sm:$0xff]
    %v1386 = vld [vmem:[#allocation25 + $0x8] sm:$0xff]
    %v1387 = vld [vmem:[#allocation25 + $0x10] sm:$0xff]
    %v1388 = vld [vmem:[#allocation25 + $0x18] sm:$0xff]
    %v1389 = vld [vmem:[#allocation25 + $0x20] sm:$0xff]
    %v1390 = vld [vmem:[#allocation25 + $0x28] sm:$0xff]
    %v1391 = vld [vmem:[#allocation25 + $0x30] sm:$0xff]
    %v1392 = vld [vmem:[#allocation25 + $0x38] sm:$0xff]
    %v1393 = vld [vmem:[#allocation25 + $0x40] sm:$0xff]
    %v1394 = vld [vmem:[#allocation25 + $0x48] sm:$0xff]
    %v1395 = vld [vmem:[#allocation25 + $0x50] sm:$0xff]
    %v1396 = vld [vmem:[#allocation25 + $0x58] sm:$0xff]
    %v1397 = vld [vmem:[#allocation25 + $0x60] sm:$0xff]
    %v1398 = vld [vmem:[#allocation25 + $0x68] sm:$0xff]
    %v1399 = vld [vmem:[#allocation25 + $0x70] sm:$0xff]
    %v1400 = vld [vmem:[#allocation25 + $0x78] sm:$0xff]
    %v1401 = vpack.c.bf16 %v1384, %v1384
    %v1402 = vld [vmem:[%s21] sm:$0x3]
    %v1404 = vperm.slane %v1402, 0
    %v1405 = vperm.slane %v1402, 1
    %v1424 = vunpack.c.l.b16 %v1385
    %v1425 = vunpack.c.h.b16 %v1385
    %v1426 = vunpack.c.l.b16 %v1386
    %v1427 = vunpack.c.h.b16 %v1386
    %v1428 = vunpack.c.l.b16 %v1387
    %v1429 = vunpack.c.h.b16 %v1387
    %v1430 = vunpack.c.l.b16 %v1388
    %v1431 = vunpack.c.h.b16 %v1388
    %v1432 = vunpack.c.l.b16 %v1389
    %v1433 = vunpack.c.h.b16 %v1389
    %v1434 = vunpack.c.l.b16 %v1390
    %v1435 = vunpack.c.h.b16 %v1390
    %v1436 = vunpack.c.l.b16 %v1391
    %v1437 = vunpack.c.h.b16 %v1391
    %v1438 = vunpack.c.l.b16 %v1392
    %v1439 = vunpack.c.h.b16 %v1392
    %v1440 = vunpack.c.l.b16 %v1393
    %v1441 = vunpack.c.h.b16 %v1393
    %v1442 = vunpack.c.l.b16 %v1394
    %v1443 = vunpack.c.h.b16 %v1394
    %v1444 = vunpack.c.l.b16 %v1395
    %v1445 = vunpack.c.h.b16 %v1395
    %v1446 = vunpack.c.l.b16 %v1396
    %v1447 = vunpack.c.h.b16 %v1396
    %v1448 = vunpack.c.l.b16 %v1397
    %v1449 = vunpack.c.h.b16 %v1397
    %v1450 = vunpack.c.l.b16 %v1398
    %v1451 = vunpack.c.h.b16 %v1398
    %v1452 = vunpack.c.l.b16 %v1399
    %v1453 = vunpack.c.h.b16 %v1399
    %v1454 = vunpack.c.l.b16 %v1400
    %v1455 = vunpack.c.h.b16 %v1400
    %v1456 = vpack.c.b16 %v1426, %v1424
    %v1457 = vpack.c.b16 %v1427, %v1425
    %v1458 = vpack.c.b16 %v1430, %v1428
    %v1459 = vpack.c.b16 %v1431, %v1429
    %v1460 = vpack.c.b16 %v1434, %v1432
    %v1461 = vpack.c.b16 %v1435, %v1433
    %v1462 = vpack.c.b16 %v1438, %v1436
    %v1463 = vpack.c.b16 %v1439, %v1437
    %v1464 = vpack.c.b16 %v1442, %v1440
    %v1465 = vpack.c.b16 %v1443, %v1441
    %v1466 = vpack.c.b16 %v1446, %v1444
    %v1467 = vpack.c.b16 %v1447, %v1445
    %v1468 = vpack.c.b16 %v1450, %v1448
    %v1469 = vpack.c.b16 %v1451, %v1449
    %v1470 = vpack.c.b16 %v1454, %v1452
    %v1471 = vpack.c.b16 %v1455, %v1453
    %1488 = vmatpush.bf16.msra.mxu0 %v1470
    %1489 = vmatpush.bf16.msra.mxu0 %v1468
    %1490 = vmatpush.bf16.msra.mxu0 %v1466
    %1491 = vmatpush.bf16.msra.mxu0 %v1464
    %1492 = vmatpush.bf16.msra.mxu0 %v1462
    %1493 = vmatpush.bf16.msra.mxu0 %v1460
    %1494 = vmatpush.bf16.msra.mxu0 %v1458
    %1495 = vmatpush.bf16.msra.mxu0 %v1456
    %1496 = vmatmul.bf16.gmra.mxu0 %v1401
    %v1497 = vpop.f32.mrf.mxu0
    %v1498 = vadd.f32 %v1404, %v1497
    %v1499 = vpop.f32.mrf.mxu0
    %1500 = vdwg.mxu0
    %1501 = vmatpush.bf16.msra.mxu0 %v1471
    %1502 = vmatpush.bf16.msra.mxu0 %v1469
    %1503 = vmatpush.bf16.msra.mxu0 %v1467
    %1504 = vmatpush.bf16.msra.mxu0 %v1465
    %1505 = vmatpush.bf16.msra.mxu0 %v1463
    %1506 = vmatpush.bf16.msra.mxu0 %v1461
    %1507 = vmatpush.bf16.msra.mxu0 %v1459
    %1508 = vmatpush.bf16.msra.mxu0 %v1457
    %1509 = vmatmul.bf16.gmra.mxu0 %v1401
    %v1510 = vpop.f32.mrf.mxu0
    %v1511 = vadd.f32 %v1405, %v1510
    %v1512 = vpop.f32.mrf.mxu0
    %1513 = vdwg.mxu0
    %v1514 = vmul.f32 %v1498, 0.5
    %v1515 = vmul.f32 %v1511, 0.5
    %v1516 = vtanh.pop %v1514
    %v1517 = vtanh.pop %v1515
    %v1518 = vadd.f32 %v1516, 1.0
    %v1519 = vadd.f32 %v1517, 1.0
    %v1520 = vmul.f32 %v1518, 0.5
    %v1521 = vmul.f32 %v1519, 0.5
    %1522 = vst [vmem:[#allocation26] sm:$0xff] %v1520
    %1523 = vst [vmem:[#allocation26 + $0x8] sm:$0xff] %v1521
    %v1524 = vmax.f32 %v1498, 0.0
    %v1525 = vmax.f32 %v1511, 0.0
    %v1526 = vmul.f32 %v1498, %v298
    %v1527 = vmul.f32 %v1511, %v299
    %v1528 = vsub.f32 %v1524, %v1526
    %v1529 = vsub.f32 %v1525, %v1527
    %v1530 = vand.u32 2147483647, %v1498
    %v1531 = vand.u32 2147483647, %v1511
    %v1532 = vsub.f32 0.0, %v1530
    %v1533 = vsub.f32 0.0, %v1531
    %v1534 = vmul.f32 %v1532, 1.442695
    %v1535 = vpow.pop %v1534
    %v1536 = vmul.f32 %v1533, 1.442695
    %v1537 = vpow.pop %v1536
    %v1538 = vadd.f32 %v1535, 1.0
    %v1539 = vlog2.pop %v1538
    %v1540 = vmul.f32 %v1539, 0.6931472
    %v1541 = vmul.f32 -0.5, %v1535
    %v1542 = vadd.f32 %v1541, 1.0
    %v1543 = vmul.f32 %v1542, %v1535
    %v1544 = vand.u32 2147483647, %v1535
    %vm1545 = vcmp.lt.f32.partialorder %v1544, 0.0004427343
    %v1546 = vsel %vm1545, %v1543, %v1540
    %v1547 = vadd.f32 %v1537, 1.0
    %v1548 = vlog2.pop %v1547
    %v1549 = vmul.f32 %v1548, 0.6931472
    %v1550 = vmul.f32 -0.5, %v1537
    %v1551 = vadd.f32 %v1550, 1.0
    %v1552 = vmul.f32 %v1551, %v1537
    %v1553 = vand.u32 2147483647, %v1537
    %vm1554 = vcmp.lt.f32.partialorder %v1553, 0.0004427343
    %v1555 = vsel %vm1554, %v1552, %v1549
    %v1556 = vadd.f32 %v1528, %v1546
    %v1557 = vadd.f32 %v1529, %v1555
    %v1558 = vadd.f32 %v1556, %v1557
    %1559 = vadd.xlane.f32.xlu0 %v1558
    %v1560 = vpop.xlane.xlu0 %1559
    %v1561 = vmul.f32 %v1190, %v1190
    %1562 = vadd.xlane.f32.xlu0 %v1561
    %v1563 = vpop.xlane.xlu0 %1562
    %v1564 = vmul.f32 %v1563, 0.5
    %v1565 = vadd.f32 %v1564, 7.351508
    %v1566 = vlaneseq
    %v1567 = vand.u32 %v1566, 127
    %vm1568 = vcmp.eq.s32.totalorder %v1567, 8
    %v1569 = vsel %vm1568, %v1560, 0.0
    %v1570 = vadd.f32 %v1190, %v1569
    %vm1571 = vcmp.eq.s32.totalorder %v1567, 9
    %v1572 = vsel %vm1571, %v1565, 0.0
    %v1573 = vadd.f32 %v1570, %v1572
    %1574 = vst [vmem:[#allocation27] sm:$0xff] %v1573
    // Predicated region
    $region150: #{tpu_custom_call.1} parent=1 // pred_check
      _
    $region151: #{tpu_custom_call.1} parent=1 // pred_check_branch
      %1576 = sbr.rel (0) target = $region153
    $region152: #{tpu_custom_call.1} parent=1 // pred_region
      %1578 = vsyncadd [#allocation4], 0
      %s1580 = sshll.u32 [#allocation26], 4
      %s1581 = int_to_ptr.vmem [resolvable:$true] %s1580
      %s1582 = sshll.u32 %s22, 4
      %s1583 = int_to_ptr.hbm [resolvable:$true] %s1582
      %1585 = dma.vmem_to_hbm [thread:$0]  %s1581, 256, %s1583, [#allocation4]
    $region153: #{tpu_custom_call.1} parent=1 // pred_fallthru
      _
    // Predicated region
    $region154: #{tpu_custom_call.1} parent=1 // pred_check
      _
    $region155: #{tpu_custom_call.1} parent=1 // pred_check_branch
      %1587 = sbr.rel (0) target = $region157
    $region156: #{tpu_custom_call.1} parent=1 // pred_region
      %1589 = vsyncadd [#allocation28], 0
      %s1591 = sshll.u32 [#allocation27], 4
      %s1592 = int_to_ptr.vmem [resolvable:$true] %s1591
      %s1593 = sshll.u32 %s23, 4
      %s1594 = int_to_ptr.hbm [resolvable:$true] %s1593
      %1596 = dma.vmem_to_hbm [thread:$0]  %s1592, 128, %s1594, [#allocation28]
    $region157: #{tpu_custom_call.1} parent=1 // pred_fallthru
      _
    // Predicated region
    $region158: #{tpu_custom_call.1} parent=1 // pred_check
      _
    $region159: #{tpu_custom_call.1} parent=1 // pred_check_branch
      %1598 = sbr.rel (0) target = $region161
    $region160: #{tpu_custom_call.1} parent=1 // pred_region
      %1600 = dma.done [#allocation4], 256
    $region161: #{tpu_custom_call.1} parent=1 // pred_fallthru
      _
    // Predicated region
    $region162: #{tpu_custom_call.1} parent=1 // pred_check
      _
    $region163: #{tpu_custom_call.1} parent=1 // pred_check_branch
      %1602 = sbr.rel (0) target = $region165
    $region164: #{tpu_custom_call.1} parent=1 // pred_region
      %1604 = dma.done [#allocation28], 128
    $region165: #{tpu_custom_call.1} parent=1 // pred_fallthru
      _
    %1605 = vsyncpa [#allocation3], 1
    %1606 = vsyncpa [#allocation6], 1
    %1607 = vsyncpa [#allocation9], 1
    %1608 = vsyncpa [#allocation12], 1
    %1609 = vsyncpa [#allocation15], 1
    %1610 = vsyncpa [#allocation18], 1
    %1611 = vsyncpa [#allocation21], 1
    %1612 = vsyncpa [#allocation24], 1
    %1613 = vsyncpa [#allocation4], 1
    %1614 = vsyncpa [#allocation28], 1

</llo_original>
